<compile_context>
chip_gen: v5e
topology: v5e:2x2
jax: 0.10.0
libtpu: 0.0.40
codegen_flags: <defaults>
</compile_context>

<pallas_src>
import functools
import math

import jax
import jax.numpy as jnp
from jax.experimental import pallas as pl
from jax.experimental.pallas import tpu as pltpu


def _m_block(M):
    for bm in (512, 256, 128):
        if M % bm == 0:
            return bm
    return M


# ---------------------------------------------------------------------------
# Kernel 1: fused LayerNorm + Linear (used for the final LNf + tied LM head)
# ---------------------------------------------------------------------------

def _ln_linear_kernel(x_ref, g_ref, b_ref, w_ref, bias_ref, o_ref, *, eps,
                      transpose_w):
    x = x_ref[...].astype(jnp.float32)
    mean = jnp.mean(x, axis=-1, keepdims=True)
    var = jnp.mean((x - mean) * (x - mean), axis=-1, keepdims=True)
    xn = (x - mean) * jax.lax.rsqrt(var + eps) * g_ref[...] + b_ref[...]
    xb = xn.astype(jnp.bfloat16)
    wb = w_ref[...].astype(jnp.bfloat16)
    dims = (((1,), (1,)), ((), ())) if transpose_w else (((1,), (0,)), ((), ()))
    acc = jax.lax.dot_general(xb, wb, dims, preferred_element_type=jnp.float32)
    o_ref[...] = (acc + bias_ref[...]).astype(o_ref.dtype)


def ln_linear(x, gamma, beta, w, bias, eps, transpose_w=False):
    M, K = x.shape
    N = w.shape[0] if transpose_w else w.shape[1]
    bm = _m_block(M)
    g2 = gamma.reshape(1, K).astype(jnp.float32)
    b2 = beta.reshape(1, K).astype(jnp.float32)
    bias2 = bias.reshape(1, N).astype(jnp.float32)
    return pl.pallas_call(
        functools.partial(_ln_linear_kernel, eps=eps, transpose_w=transpose_w),
        out_shape=jax.ShapeDtypeStruct((M, N), jnp.float32),
        grid=(M // bm,),
        in_specs=[pl.BlockSpec((bm, K), lambda i: (i, 0)),
                  pl.BlockSpec((1, K), lambda i: (0, 0)),
                  pl.BlockSpec((1, K), lambda i: (0, 0)),
                  pl.BlockSpec(w.shape, lambda i: (0, 0)),
                  pl.BlockSpec((1, N), lambda i: (0, 0))],
        out_specs=pl.BlockSpec((bm, N), lambda i: (i, 0)),
        compiler_params=pltpu.CompilerParams(
            dimension_semantics=("parallel",)),
    )(x, g2, b2, w, bias2)


# ---------------------------------------------------------------------------
# Kernel 2: one fully-fused GPT-2 decoder layer (grid over batch)
#   LN1 -> QKV -> per-head attention (past KV, causal+padding mask) ->
#   output proj -> +residual -> LN2 -> MLP(gelu_new) -> +residual
# ---------------------------------------------------------------------------

def _gpt2_layer_kernel(*refs, n_head, has_past, eps):
    if has_past:
        (h_ref, pk_ref, pv_ref, m_ref,
         ln1g, ln1b, wqkv, bqkv, wproj, bproj,
         ln2g, ln2b, wfc, bfc, wfc2, bfc2,
         o_ref, prk_ref, prv_ref, ctx_scr) = refs
    else:
        (h_ref, m_ref,
         ln1g, ln1b, wqkv, bqkv, wproj, bproj,
         ln2g, ln2b, wfc, bfc, wfc2, bfc2,
         o_ref, prk_ref, prv_ref, ctx_scr) = refs
        pk_ref = pv_ref = None

    T, E = h_ref.shape
    Dh = E // n_head
    total = prk_ref.shape[2]
    P = total - T
    scale = 1.0 / math.sqrt(Dh)

    x = h_ref[...].astype(jnp.float32)                              # (T, E)

    # ---- LN1 + fused QKV projection ------------------------------------
    mu = jnp.mean(x, axis=-1, keepdims=True)
    var = jnp.mean((x - mu) * (x - mu), axis=-1, keepdims=True)
    xn = (x - mu) * jax.lax.rsqrt(var + eps) * ln1g[...] + ln1b[...]
    qkv = jax.lax.dot_general(xn.astype(jnp.bfloat16),
                              wqkv[...].astype(jnp.bfloat16),
                              (((1,), (0,)), ((), ())),
                              preferred_element_type=jnp.float32) + bqkv[...]

    # ---- additive bias (padding + causal), built in-kernel: (T, total) --
    pad = (1.0 - m_ref[0]) * jnp.float32(-1e9)                      # (1, total)
    q_idx = jax.lax.broadcasted_iota(jnp.int32, (T, total), 0) + P
    k_idx = jax.lax.broadcasted_iota(jnp.int32, (T, total), 1)
    bias = pad + jnp.where(k_idx <= q_idx, jnp.float32(0.0), jnp.float32(-1e9))

    # ---- per-head attention; context assembled lane-dense in VMEM scratch
    for h in range(n_head):
        q_h = qkv[:, h * Dh:(h + 1) * Dh] * scale                   # (T, Dh)
        k_h = qkv[:, E + h * Dh:E + (h + 1) * Dh]                   # (T, Dh)
        v_h = qkv[:, 2 * E + h * Dh:2 * E + (h + 1) * Dh]           # (T, Dh)

        # Assemble present K/V directly in the output refs (no concatenate).
        if has_past:
            prk_ref[0, h, :P, :] = pk_ref[0, h]
            prv_ref[0, h, :P, :] = pv_ref[0, h]
        prk_ref[0, h, P:, :] = k_h
        prv_ref[0, h, P:, :] = v_h

        kf = prk_ref[0, h]                                          # (total, Dh)
        vf = prv_ref[0, h]

        s = jax.lax.dot_general(q_h.astype(jnp.bfloat16),
                                kf.astype(jnp.bfloat16),
                                (((1,), (1,)), ((), ())),
                                preferred_element_type=jnp.float32) + bias
        mx = jnp.max(s, axis=-1, keepdims=True)
        p = jnp.exp(s - mx)
        p = p * pl.reciprocal(jnp.sum(p, axis=-1, keepdims=True), approx=True)
        ctx_scr[:, h * Dh:(h + 1) * Dh] = jax.lax.dot_general(
            p.astype(jnp.bfloat16), vf.astype(jnp.bfloat16),
            (((1,), (0,)), ((), ())), preferred_element_type=jnp.float32)

    # ---- output projection + residual 1 ---------------------------------
    a = jax.lax.dot_general(ctx_scr[...].astype(jnp.bfloat16),
                            wproj[...].astype(jnp.bfloat16),
                            (((1,), (0,)), ((), ())),
                            preferred_element_type=jnp.float32) + bproj[...]
    h1 = x + a

    # ---- LN2 + MLP(gelu_new) + residual 2 --------------------------------
    mu2 = jnp.mean(h1, axis=-1, keepdims=True)
    var2 = jnp.mean((h1 - mu2) * (h1 - mu2), axis=-1, keepdims=True)
    xn2 = (h1 - mu2) * jax.lax.rsqrt(var2 + eps) * ln2g[...] + ln2b[...]
    m = jax.lax.dot_general(xn2.astype(jnp.bfloat16),
                            wfc[...].astype(jnp.bfloat16),
                            (((1,), (0,)), ((), ())),
                            preferred_element_type=jnp.float32) + bfc[...]
    c = math.sqrt(2.0 / math.pi)
    m = 0.5 * m * (1.0 + jnp.tanh(c * (m + 0.044715 * m * m * m)))   # gelu_new
    m2 = jax.lax.dot_general(m.astype(jnp.bfloat16),
                             wfc2[...].astype(jnp.bfloat16),
                             (((1,), (0,)), ((), ())),
                             preferred_element_type=jnp.float32) + bfc2[...]
    o_ref[...] = (h1 + m2).astype(o_ref.dtype)


def gpt2_layer(h, past, mask3, lp, B, T, H, Dh, eps):
    E = H * Dh
    inner = lp["fc_w"].shape[1]
    has_past = past is not None
    P = past[0].shape[2] if has_past else 0
    total = P + T

    inputs = [h]
    in_specs = [pl.BlockSpec((T, E), lambda b: (b, 0))]
    if has_past:
        inputs += [past[0], past[1]]
        in_specs += [pl.BlockSpec((1, H, P, Dh), lambda b: (b, 0, 0, 0)),
                     pl.BlockSpec((1, H, P, Dh), lambda b: (b, 0, 0, 0))]
    inputs += [mask3,
               lp["ln1_g"].reshape(1, E), lp["ln1_b"].reshape(1, E),
               lp["attn_w"], lp["attn_b"].reshape(1, 3 * E),
               lp["proj_w"], lp["proj_b"].reshape(1, E),
               lp["ln2_g"].reshape(1, E), lp["ln2_b"].reshape(1, E),
               lp["fc_w"], lp["fc_b"].reshape(1, inner),
               lp["fc2_w"], lp["fc2_b"].reshape(1, E)]
    in_specs += [pl.BlockSpec((1, 1, total), lambda b: (b, 0, 0)),
                 pl.BlockSpec((1, E), lambda b: (0, 0)),
                 pl.BlockSpec((1, E), lambda b: (0, 0)),
                 pl.BlockSpec((E, 3 * E), lambda b: (0, 0)),
                 pl.BlockSpec((1, 3 * E), lambda b: (0, 0)),
                 pl.BlockSpec((E, E), lambda b: (0, 0)),
                 pl.BlockSpec((1, E), lambda b: (0, 0)),
                 pl.BlockSpec((1, E), lambda b: (0, 0)),
                 pl.BlockSpec((1, E), lambda b: (0, 0)),
                 pl.BlockSpec((E, inner), lambda b: (0, 0)),
                 pl.BlockSpec((1, inner), lambda b: (0, 0)),
                 pl.BlockSpec((inner, E), lambda b: (0, 0)),
                 pl.BlockSpec((1, E), lambda b: (0, 0))]

    out_shape = (jax.ShapeDtypeStruct((B * T, E), jnp.float32),
                 jax.ShapeDtypeStruct((B, H, total, Dh), jnp.float32),
                 jax.ShapeDtypeStruct((B, H, total, Dh), jnp.float32))
    out_specs = (pl.BlockSpec((T, E), lambda b: (b, 0)),
                 pl.BlockSpec((1, H, total, Dh), lambda b: (b, 0, 0, 0)),
                 pl.BlockSpec((1, H, total, Dh), lambda b: (b, 0, 0, 0)))

    return pl.pallas_call(
        functools.partial(_gpt2_layer_kernel, n_head=H, has_past=has_past,
                          eps=eps),
        out_shape=out_shape,
        grid=(B,),
        in_specs=in_specs,
        out_specs=out_specs,
        scratch_shapes=[pltpu.VMEM((T, E), jnp.float32)],
        compiler_params=pltpu.CompilerParams(
            dimension_semantics=("parallel",)),
    )(*inputs)


# ---------------------------------------------------------------------------
# GPT-2 style model (embedding gather is plain-JAX glue)
# ---------------------------------------------------------------------------

CFG = dict(vocab=64, n_embd=32, n_head=4, n_layer=2, n_positions=64, eps=1e-5)


def init_params(key, cfg):
    E, V, P = cfg["n_embd"], cfg["vocab"], cfg["n_positions"]
    n_layer = cfg["n_layer"]
    inner = 4 * E

    def nrm(k, shape, dtype, scale=0.02):
        return (scale * jax.random.normal(k, shape, dtype=jnp.float32)).astype(dtype)

    keys = jax.random.split(key, 2 + 6 * n_layer)
    params = {
        "wte": nrm(keys[0], (V, E), jnp.bfloat16),
        "wpe": nrm(keys[1], (P, E), jnp.float32),
        "lnf_g": jnp.ones((E,), jnp.float32),
        "lnf_b": jnp.zeros((E,), jnp.float32),
        "layers": [],
    }
    for l in range(n_layer):
        k = keys[2 + 6 * l: 2 + 6 * (l + 1)]
        params["layers"].append({
            "ln1_g": jnp.ones((E,), jnp.float32),
            "ln1_b": jnp.zeros((E,), jnp.float32),
            "attn_w": nrm(k[0], (E, 3 * E), jnp.bfloat16),
            "attn_b": jnp.zeros((3 * E,), jnp.float32),
            "proj_w": nrm(k[1], (E, E), jnp.bfloat16),
            "proj_b": jnp.zeros((E,), jnp.float32),
            "ln2_g": jnp.ones((E,), jnp.float32),
            "ln2_b": jnp.zeros((E,), jnp.float32),
            "fc_w": nrm(k[2], (E, inner), jnp.bfloat16),
            "fc_b": jnp.zeros((inner,), jnp.float32),
            "fc2_w": nrm(k[3], (inner, E), jnp.bfloat16),
            "fc2_b": jnp.zeros((E,), jnp.float32),
        })
    return params


def gpt2_forward(params, input_ids, past_key_values, attention_mask, cfg):
    B, T = input_ids.shape
    E, H = cfg["n_embd"], cfg["n_head"]
    Dh = E // H
    eps = cfg["eps"]

    past_len = 0 if past_key_values is None else past_key_values[0][0].shape[2]
    total = past_len + T

    # embeddings (gather = glue)
    pos = past_len + jnp.arange(T)
    h = (params["wte"][input_ids].astype(jnp.float32)
         + params["wpe"][pos][None, :, :])                          # (B,T,E)
    h = h.reshape(B * T, E)

    # padding mask shipped to the fused layer kernel as (B,1,total)
    mask3 = attention_mask.astype(jnp.float32).reshape(B, 1, total)

    presents = []
    for l, lp in enumerate(params["layers"]):
        past = None if past_key_values is None else past_key_values[l]
        h, pk, pv = gpt2_layer(h, past, mask3, lp, B, T, H, Dh, eps)
        presents.append((pk, pv))

    # final LN + tied LM head (wte used untransposed via dot_general)
    V = params["wte"].shape[0]
    logits = ln_linear(h, params["lnf_g"], params["lnf_b"], params["wte"],
                       jnp.zeros((V,), jnp.float32), eps, transpose_w=True)
    return logits.reshape(B, T, V), presents


def wrapper_forward(params, input_ids, attention_mask, *kv, cfg=CFG):
    """Exact semantics of the PyTorch Wrapper.forward."""
    num_past_key_values = len(kv)
    past_key_values = None if num_past_key_values == 0 else []
    for i in range(num_past_key_values // 2):
        past_key_values.append((kv[2 * i], kv[2 * i + 1]))
    return gpt2_forward(params, input_ids, past_key_values, attention_mask, cfg)


# ---------------------------------------------------------------------------

if __name__ == "__main__":
    B, T, PAST = 2, 8, 8
    E, H, L = CFG["n_embd"], CFG["n_head"], CFG["n_layer"]
    Dh = E // H

    root = jax.random.PRNGKey(0)
    k_params, k_ids, k_kv = jax.random.split(root, 3)

    params = init_params(k_params, CFG)

    input_ids = jax.random.randint(k_ids, (B, T), 0, CFG["vocab"], dtype=jnp.int32)
    attention_mask = jnp.ones((B, PAST + T), dtype=jnp.float32)

    kv_keys = jax.random.split(k_kv, 2 * L)
    kv_flat = tuple(
        0.02 * jax.random.normal(kv_keys[i], (B, H, PAST, Dh), dtype=jnp.float32)
        for i in range(2 * L)
    )

    fwd = jax.jit(functools.partial(wrapper_forward, cfg=CFG))
    logits, presents = fwd(params, input_ids, attention_mask, *kv_flat)
    jax.block_until_ready(logits)
    jax.block_until_ready(presents)

    assert logits.shape == (B, T, CFG["vocab"])
    assert presents[0][0].shape == (B, H, PAST + T, Dh)
    assert bool(jnp.all(jnp.isfinite(logits)))
    print("KERNEL_OK")
</pallas_src>

<mosaic_0001>
module attributes {stable_mosaic.version = 11 : i64} {
  func.func @_gpt2_layer_kernel(%arg0: i32, %arg1: memref<8x32xf32, #tpu.memory_space<vmem>>, %arg2: memref<1x4x8x8xf32, #tpu.memory_space<vmem>>, %arg3: memref<1x4x8x8xf32, #tpu.memory_space<vmem>>, %arg4: memref<1x1x16xf32, #tpu.memory_space<vmem>>, %arg5: memref<1x32xf32, #tpu.memory_space<vmem>>, %arg6: memref<1x32xf32, #tpu.memory_space<vmem>>, %arg7: memref<32x96xbf16, #tpu.memory_space<vmem>>, %arg8: memref<1x96xf32, #tpu.memory_space<vmem>>, %arg9: memref<32x32xbf16, #tpu.memory_space<vmem>>, %arg10: memref<1x32xf32, #tpu.memory_space<vmem>>, %arg11: memref<1x32xf32, #tpu.memory_space<vmem>>, %arg12: memref<1x32xf32, #tpu.memory_space<vmem>>, %arg13: memref<32x128xbf16, #tpu.memory_space<vmem>>, %arg14: memref<1x128xf32, #tpu.memory_space<vmem>>, %arg15: memref<128x32xbf16, #tpu.memory_space<vmem>>, %arg16: memref<1x32xf32, #tpu.memory_space<vmem>>, %arg17: memref<8x32xf32, #tpu.memory_space<vmem>>, %arg18: memref<1x4x16x8xf32, #tpu.memory_space<vmem>>, %arg19: memref<1x4x16x8xf32, #tpu.memory_space<vmem>>, %arg20: memref<8x32xf32, #tpu.memory_space<vmem>>) attributes {dimension_semantics = [#tpu.dimension_semantics<parallel>], iteration_bounds = array<i64: 2>, scalar_prefetch = 0 : i64, scratch_operands = 1 : i64, tpu.core_type = #tpu.core_type<tc>, window_params = [{transform_indices = @transform_0, window_bounds = array<i64: 8, 32>}, {transform_indices = @transform_1, window_bounds = array<i64: 1, 4, 8, 8>}, {transform_indices = @transform_2, window_bounds = array<i64: 1, 4, 8, 8>}, {transform_indices = @transform_3, window_bounds = array<i64: 1, 1, 16>}, {pipeline_mode = #tpu.pipeline_mode<synchronous>, transform_indices = @transform_4, window_bounds = array<i64: 1, 32>}, {pipeline_mode = #tpu.pipeline_mode<synchronous>, transform_indices = @transform_5, window_bounds = array<i64: 1, 32>}, {pipeline_mode = #tpu.pipeline_mode<synchronous>, transform_indices = @transform_6, window_bounds = array<i64: 32, 96>}, {pipeline_mode = #tpu.pipeline_mode<synchronous>, transform_indices = @transform_7, window_bounds = array<i64: 1, 96>}, {pipeline_mode = #tpu.pipeline_mode<synchronous>, transform_indices = @transform_8, window_bounds = array<i64: 32, 32>}, {pipeline_mode = #tpu.pipeline_mode<synchronous>, transform_indices = @transform_9, window_bounds = array<i64: 1, 32>}, {pipeline_mode = #tpu.pipeline_mode<synchronous>, transform_indices = @transform_10, window_bounds = array<i64: 1, 32>}, {pipeline_mode = #tpu.pipeline_mode<synchronous>, transform_indices = @transform_11, window_bounds = array<i64: 1, 32>}, {pipeline_mode = #tpu.pipeline_mode<synchronous>, transform_indices = @transform_12, window_bounds = array<i64: 32, 128>}, {pipeline_mode = #tpu.pipeline_mode<synchronous>, transform_indices = @transform_13, window_bounds = array<i64: 1, 128>}, {pipeline_mode = #tpu.pipeline_mode<synchronous>, transform_indices = @transform_14, window_bounds = array<i64: 128, 32>}, {pipeline_mode = #tpu.pipeline_mode<synchronous>, transform_indices = @transform_15, window_bounds = array<i64: 1, 32>}, {transform_indices = @transform_16, window_bounds = array<i64: 8, 32>}, {transform_indices = @transform_17, window_bounds = array<i64: 1, 4, 16, 8>}, {transform_indices = @transform_18, window_bounds = array<i64: 1, 4, 16, 8>}]} {
    %c0 = arith.constant 0 : index
    %c0_0 = arith.constant 0 : index
    %0 = vector.load %arg1[%c0, %c0_0] : memref<8x32xf32, #tpu.memory_space<vmem>>, vector<8x32xf32>
    %cst = arith.constant dense<0.000000e+00> : vector<8xf32>
    %1 = vector.multi_reduction <add>, %0, %cst [1] : vector<8x32xf32> to vector<8xf32>
    %2 = vector.shape_cast %1 : vector<8xf32> to vector<8x1xf32>
    %cst_1 = arith.constant 3.200000e+01 : f32
    %3 = vector.broadcast %cst_1 : f32 to vector<8x1xf32>
    %4 = arith.divf %2, %3 : vector<8x1xf32>
    %5 = vector.broadcast %4 : vector<8x1xf32> to vector<8x32xf32>
    %6 = arith.subf %0, %5 : vector<8x32xf32>
    %7 = vector.broadcast %4 : vector<8x1xf32> to vector<8x32xf32>
    %8 = arith.subf %0, %7 : vector<8x32xf32>
    %9 = arith.mulf %6, %8 : vector<8x32xf32>
    %cst_2 = arith.constant dense<0.000000e+00> : vector<8xf32>
    %10 = vector.multi_reduction <add>, %9, %cst_2 [1] : vector<8x32xf32> to vector<8xf32>
    %11 = vector.shape_cast %10 : vector<8xf32> to vector<8x1xf32>
    %cst_3 = arith.constant 3.200000e+01 : f32
    %12 = vector.broadcast %cst_3 : f32 to vector<8x1xf32>
    %13 = arith.divf %11, %12 : vector<8x1xf32>
    %14 = vector.broadcast %4 : vector<8x1xf32> to vector<8x32xf32>
    %15 = arith.subf %0, %14 : vector<8x32xf32>
    %cst_4 = arith.constant 9.99999974E-6 : f32
    %16 = vector.broadcast %cst_4 : f32 to vector<8x1xf32>
    %17 = arith.addf %13, %16 : vector<8x1xf32>
    %18 = math.rsqrt %17 : vector<8x1xf32>
    %19 = vector.broadcast %18 : vector<8x1xf32> to vector<8x32xf32>
    %20 = arith.mulf %15, %19 : vector<8x32xf32>
    %c0_5 = arith.constant 0 : index
    %c0_6 = arith.constant 0 : index
    %21 = vector.load %arg5[%c0_5, %c0_6] : memref<1x32xf32, #tpu.memory_space<vmem>>, vector<1x32xf32>
    %22 = vector.broadcast %21 : vector<1x32xf32> to vector<8x32xf32>
    %23 = arith.mulf %20, %22 : vector<8x32xf32>
    %c0_7 = arith.constant 0 : index
    %c0_8 = arith.constant 0 : index
    %24 = vector.load %arg6[%c0_7, %c0_8] : memref<1x32xf32, #tpu.memory_space<vmem>>, vector<1x32xf32>
    %25 = vector.broadcast %24 : vector<1x32xf32> to vector<8x32xf32>
    %26 = arith.addf %23, %25 : vector<8x32xf32>
    %27 = arith.truncf %26 : vector<8x32xf32> to vector<8x32xbf16>
    %c0_9 = arith.constant 0 : index
    %c0_10 = arith.constant 0 : index
    %28 = vector.load %arg7[%c0_9, %c0_10] : memref<32x96xbf16, #tpu.memory_space<vmem>>, vector<32x96xbf16>
    %cst_11 = arith.constant dense<0.000000e+00> : vector<8x96xf32>
    %29 = tpu.matmul %27, %28, %cst_11 {dimension_numbers = #tpu.dot_dimension_numbers<[1], [0], [0], [1], [0, 0, 1, 1], [], []>} : vector<8x32xbf16>, vector<32x96xbf16>, vector<8x96xf32> -> vector<8x96xf32>
    %c0_12 = arith.constant 0 : index
    %c0_13 = arith.constant 0 : index
    %30 = vector.load %arg8[%c0_12, %c0_13] : memref<1x96xf32, #tpu.memory_space<vmem>>, vector<1x96xf32>
    %31 = vector.broadcast %30 : vector<1x96xf32> to vector<8x96xf32>
    %32 = arith.addf %29, %31 : vector<8x96xf32>
    %c0_14 = arith.constant 0 : index
    %c0_15 = arith.constant 0 : index
    %c0_16 = arith.constant 0 : index
    %33 = vector.load %arg4[%c0_14, %c0_15, %c0_16] : memref<1x1x16xf32, #tpu.memory_space<vmem>>, vector<1x1x16xf32>
    %34 = vector.shape_cast %33 : vector<1x1x16xf32> to vector<1x16xf32>
    %cst_17 = arith.constant 1.000000e+00 : f32
    %35 = vector.broadcast %cst_17 : f32 to vector<1x16xf32>
    %36 = arith.subf %35, %34 : vector<1x16xf32>
    %cst_18 = arith.constant -1.000000e+09 : f32
    %37 = vector.broadcast %cst_18 : f32 to vector<1x16xf32>
    %38 = arith.mulf %36, %37 : vector<1x16xf32>
    %39 = tpu.iota {dimensions = array<i32: 0>} : vector<8x16xi32>
    %c8_i32 = arith.constant 8 : i32
    %40 = vector.broadcast %c8_i32 : i32 to vector<8x16xi32>
    %41 = arith.addi %39, %40 : vector<8x16xi32>
    %42 = tpu.iota {dimensions = array<i32: 1>} : vector<8x16xi32>
    %43 = arith.cmpi sle, %42, %41 : vector<8x16xi32>
    %cst_19 = arith.constant 0.000000e+00 : f32
    %cst_20 = arith.constant -1.000000e+09 : f32
    %44 = vector.broadcast %cst_19 : f32 to vector<8x16xf32>
    %45 = vector.broadcast %cst_20 : f32 to vector<8x16xf32>
    %46 = arith.select %43, %44, %45 : vector<8x16xi1>, vector<8x16xf32>
    %47 = vector.broadcast %38 : vector<1x16xf32> to vector<8x16xf32>
    %48 = arith.addf %47, %46 : vector<8x16xf32>
    %49 = vector.extract_strided_slice %32 {offsets = [0, 0], sizes = [8, 8], strides = [1, 1]} : vector<8x96xf32> to vector<8x8xf32>
    %cst_21 = arith.constant 0.353553385 : f32
    %50 = vector.broadcast %cst_21 : f32 to vector<8x8xf32>
    %51 = arith.mulf %49, %50 : vector<8x8xf32>
    %52 = vector.extract_strided_slice %32 {offsets = [0, 32], sizes = [8, 8], strides = [1, 1]} : vector<8x96xf32> to vector<8x8xf32>
    %53 = vector.extract_strided_slice %32 {offsets = [0, 64], sizes = [8, 8], strides = [1, 1]} : vector<8x96xf32> to vector<8x8xf32>
    %c0_22 = arith.constant 0 : index
    %c0_23 = arith.constant 0 : index
    %c0_24 = arith.constant 0 : index
    %c0_25 = arith.constant 0 : index
    %54 = vector.load %arg2[%c0_22, %c0_23, %c0_24, %c0_25] : memref<1x4x8x8xf32, #tpu.memory_space<vmem>>, vector<1x1x8x8xf32>
    %55 = vector.shape_cast %54 : vector<1x1x8x8xf32> to vector<8x8xf32>
    %c0_26 = arith.constant 0 : index
    %c0_27 = arith.constant 0 : index
    %c0_28 = arith.constant 0 : index
    %c0_29 = arith.constant 0 : index
    %56 = vector.load %arg18[%c0_26, %c0_27, %c0_28, %c0_29] : memref<1x4x16x8xf32, #tpu.memory_space<vmem>>, vector<1x1x8x8xf32>
    %57 = vector.shape_cast %56 : vector<1x1x8x8xf32> to vector<8x8xf32>
    %58 = vector.shape_cast %55 : vector<8x8xf32> to vector<1x1x8x8xf32>
    tpu.vector_store %arg18[%c0_26, %c0_27, %c0_28, %c0_29], %58 {strides = array<i32>} : memref<1x4x16x8xf32, #tpu.memory_space<vmem>>, vector<1x1x8x8xf32>,
    %c0_30 = arith.constant 0 : index
    %c0_31 = arith.constant 0 : index
    %c0_32 = arith.constant 0 : index
    %c0_33 = arith.constant 0 : index
    %59 = vector.load %arg3[%c0_30, %c0_31, %c0_32, %c0_33] : memref<1x4x8x8xf32, #tpu.memory_space<vmem>>, vector<1x1x8x8xf32>
    %60 = vector.shape_cast %59 : vector<1x1x8x8xf32> to vector<8x8xf32>
    %c0_34 = arith.constant 0 : index
    %c0_35 = arith.constant 0 : index
    %c0_36 = arith.constant 0 : index
    %c0_37 = arith.constant 0 : index
    %61 = vector.load %arg19[%c0_34, %c0_35, %c0_36, %c0_37] : memref<1x4x16x8xf32, #tpu.memory_space<vmem>>, vector<1x1x8x8xf32>
    %62 = vector.shape_cast %61 : vector<1x1x8x8xf32> to vector<8x8xf32>
    %63 = vector.shape_cast %60 : vector<8x8xf32> to vector<1x1x8x8xf32>
    tpu.vector_store %arg19[%c0_34, %c0_35, %c0_36, %c0_37], %63 {strides = array<i32>} : memref<1x4x16x8xf32, #tpu.memory_space<vmem>>, vector<1x1x8x8xf32>,
    %c0_38 = arith.constant 0 : index
    %c0_39 = arith.constant 0 : index
    %c8 = arith.constant 8 : index
    %c0_40 = arith.constant 0 : index
    %64 = vector.load %arg18[%c0_38, %c0_39, %c8, %c0_40] : memref<1x4x16x8xf32, #tpu.memory_space<vmem>>, vector<1x1x8x8xf32>
    %65 = vector.shape_cast %64 : vector<1x1x8x8xf32> to vector<8x8xf32>
    %66 = vector.shape_cast %52 : vector<8x8xf32> to vector<1x1x8x8xf32>
    tpu.vector_store %arg18[%c0_38, %c0_39, %c8, %c0_40], %66 {strides = array<i32>} : memref<1x4x16x8xf32, #tpu.memory_space<vmem>>, vector<1x1x8x8xf32>,
    %c0_41 = arith.constant 0 : index
    %c0_42 = arith.constant 0 : index
    %c8_43 = arith.constant 8 : index
    %c0_44 = arith.constant 0 : index
    %67 = vector.load %arg19[%c0_41, %c0_42, %c8_43, %c0_44] : memref<1x4x16x8xf32, #tpu.memory_space<vmem>>, vector<1x1x8x8xf32>
    %68 = vector.shape_cast %67 : vector<1x1x8x8xf32> to vector<8x8xf32>
    %69 = vector.shape_cast %53 : vector<8x8xf32> to vector<1x1x8x8xf32>
    tpu.vector_store %arg19[%c0_41, %c0_42, %c8_43, %c0_44], %69 {strides = array<i32>} : memref<1x4x16x8xf32, #tpu.memory_space<vmem>>, vector<1x1x8x8xf32>,
    %c0_45 = arith.constant 0 : index
    %c0_46 = arith.constant 0 : index
    %c0_47 = arith.constant 0 : index
    %c0_48 = arith.constant 0 : index
    %70 = vector.load %arg18[%c0_45, %c0_46, %c0_47, %c0_48] : memref<1x4x16x8xf32, #tpu.memory_space<vmem>>, vector<1x1x16x8xf32>
    %71 = vector.shape_cast %70 : vector<1x1x16x8xf32> to vector<16x8xf32>
    %c0_49 = arith.constant 0 : index
    %c0_50 = arith.constant 0 : index
    %c0_51 = arith.constant 0 : index
    %c0_52 = arith.constant 0 : index
    %72 = vector.load %arg19[%c0_49, %c0_50, %c0_51, %c0_52] : memref<1x4x16x8xf32, #tpu.memory_space<vmem>>, vector<1x1x16x8xf32>
    %73 = vector.shape_cast %72 : vector<1x1x16x8xf32> to vector<16x8xf32>
    %74 = arith.truncf %51 : vector<8x8xf32> to vector<8x8xbf16>
    %75 = arith.truncf %71 : vector<16x8xf32> to vector<16x8xbf16>
    %cst_53 = arith.constant dense<0.000000e+00> : vector<8x16xf32>
    %76 = tpu.matmul %74, %75, %cst_53 {dimension_numbers = #tpu.dot_dimension_numbers<[1], [1], [0], [0], [0, 0, 1, 0], [], []>} : vector<8x8xbf16>, vector<16x8xbf16>, vector<8x16xf32> -> vector<8x16xf32>
    %77 = arith.addf %76, %48 : vector<8x16xf32>
    %cst_54 = arith.constant dense<0xFF800000> : vector<8xf32>
    %78 = vector.multi_reduction <maximumf>, %77, %cst_54 [1] : vector<8x16xf32> to vector<8xf32>
    %79 = vector.shape_cast %78 : vector<8xf32> to vector<8x1xf32>
    %80 = vector.broadcast %79 : vector<8x1xf32> to vector<8x16xf32>
    %81 = arith.subf %77, %80 : vector<8x16xf32>
    %82 = math.exp %81 : vector<8x16xf32>
    %cst_55 = arith.constant dense<0.000000e+00> : vector<8xf32>
    %83 = vector.multi_reduction <add>, %82, %cst_55 [1] : vector<8x16xf32> to vector<8xf32>
    %84 = vector.shape_cast %83 : vector<8xf32> to vector<8x1xf32>
    %85 = tpu.reciprocal %84 {approx = true} : vector<8x1xf32> -> vector<8x1xf32>
    %86 = vector.broadcast %85 : vector<8x1xf32> to vector<8x16xf32>
    %87 = arith.mulf %82, %86 : vector<8x16xf32>
    %88 = arith.truncf %87 : vector<8x16xf32> to vector<8x16xbf16>
    %89 = arith.truncf %73 : vector<16x8xf32> to vector<16x8xbf16>
    %cst_56 = arith.constant dense<0.000000e+00> : vector<8x8xf32>
    %90 = tpu.matmul %88, %89, %cst_56 {dimension_numbers = #tpu.dot_dimension_numbers<[1], [0], [0], [1], [0, 0, 1, 1], [], []>} : vector<8x16xbf16>, vector<16x8xbf16>, vector<8x8xf32> -> vector<8x8xf32>
    %c0_57 = arith.constant 0 : index
    %c0_58 = arith.constant 0 : index
    %91 = vector.load %arg20[%c0_57, %c0_58] : memref<8x32xf32, #tpu.memory_space<vmem>>, vector<8x8xf32>
    tpu.vector_store %arg20[%c0_57, %c0_58], %90 {strides = array<i32>} : memref<8x32xf32, #tpu.memory_space<vmem>>, vector<8x8xf32>,
    %92 = vector.extract_strided_slice %32 {offsets = [0, 8], sizes = [8, 8], strides = [1, 1]} : vector<8x96xf32> to vector<8x8xf32>
    %cst_59 = arith.constant 0.353553385 : f32
    %93 = vector.broadcast %cst_59 : f32 to vector<8x8xf32>
    %94 = arith.mulf %92, %93 : vector<8x8xf32>
    %95 = vector.extract_strided_slice %32 {offsets = [0, 40], sizes = [8, 8], strides = [1, 1]} : vector<8x96xf32> to vector<8x8xf32>
    %96 = vector.extract_strided_slice %32 {offsets = [0, 72], sizes = [8, 8], strides = [1, 1]} : vector<8x96xf32> to vector<8x8xf32>
    %c0_60 = arith.constant 0 : index
    %c1 = arith.constant 1 : index
    %c0_61 = arith.constant 0 : index
    %c0_62 = arith.constant 0 : index
    %97 = vector.load %arg2[%c0_60, %c1, %c0_61, %c0_62] : memref<1x4x8x8xf32, #tpu.memory_space<vmem>>, vector<1x1x8x8xf32>
    %98 = vector.shape_cast %97 : vector<1x1x8x8xf32> to vector<8x8xf32>
    %c0_63 = arith.constant 0 : index
    %c1_64 = arith.constant 1 : index
    %c0_65 = arith.constant 0 : index
    %c0_66 = arith.constant 0 : index
    %99 = vector.load %arg18[%c0_63, %c1_64, %c0_65, %c0_66] : memref<1x4x16x8xf32, #tpu.memory_space<vmem>>, vector<1x1x8x8xf32>
    %100 = vector.shape_cast %99 : vector<1x1x8x8xf32> to vector<8x8xf32>
    %101 = vector.shape_cast %98 : vector<8x8xf32> to vector<1x1x8x8xf32>
    tpu.vector_store %arg18[%c0_63, %c1_64, %c0_65, %c0_66], %101 {strides = array<i32>} : memref<1x4x16x8xf32, #tpu.memory_space<vmem>>, vector<1x1x8x8xf32>,
    %c0_67 = arith.constant 0 : index
    %c1_68 = arith.constant 1 : index
    %c0_69 = arith.constant 0 : index
    %c0_70 = arith.constant 0 : index
    %102 = vector.load %arg3[%c0_67, %c1_68, %c0_69, %c0_70] : memref<1x4x8x8xf32, #tpu.memory_space<vmem>>, vector<1x1x8x8xf32>
    %103 = vector.shape_cast %102 : vector<1x1x8x8xf32> to vector<8x8xf32>
    %c0_71 = arith.constant 0 : index
    %c1_72 = arith.constant 1 : index
    %c0_73 = arith.constant 0 : index
    %c0_74 = arith.constant 0 : index
    %104 = vector.load %arg19[%c0_71, %c1_72, %c0_73, %c0_74] : memref<1x4x16x8xf32, #tpu.memory_space<vmem>>, vector<1x1x8x8xf32>
    %105 = vector.shape_cast %104 : vector<1x1x8x8xf32> to vector<8x8xf32>
    %106 = vector.shape_cast %103 : vector<8x8xf32> to vector<1x1x8x8xf32>
    tpu.vector_store %arg19[%c0_71, %c1_72, %c0_73, %c0_74], %106 {strides = array<i32>} : memref<1x4x16x8xf32, #tpu.memory_space<vmem>>, vector<1x1x8x8xf32>,
    %c0_75 = arith.constant 0 : index
    %c1_76 = arith.constant 1 : index
    %c8_77 = arith.constant 8 : index
    %c0_78 = arith.constant 0 : index
    %107 = vector.load %arg18[%c0_75, %c1_76, %c8_77, %c0_78] : memref<1x4x16x8xf32, #tpu.memory_space<vmem>>, vector<1x1x8x8xf32>
    %108 = vector.shape_cast %107 : vector<1x1x8x8xf32> to vector<8x8xf32>
    %109 = vector.shape_cast %95 : vector<8x8xf32> to vector<1x1x8x8xf32>
    tpu.vector_store %arg18[%c0_75, %c1_76, %c8_77, %c0_78], %109 {strides = array<i32>} : memref<1x4x16x8xf32, #tpu.memory_space<vmem>>, vector<1x1x8x8xf32>,
    %c0_79 = arith.constant 0 : index
    %c1_80 = arith.constant 1 : index
    %c8_81 = arith.constant 8 : index
    %c0_82 = arith.constant 0 : index
    %110 = vector.load %arg19[%c0_79, %c1_80, %c8_81, %c0_82] : memref<1x4x16x8xf32, #tpu.memory_space<vmem>>, vector<1x1x8x8xf32>
    %111 = vector.shape_cast %110 : vector<1x1x8x8xf32> to vector<8x8xf32>
    %112 = vector.shape_cast %96 : vector<8x8xf32> to vector<1x1x8x8xf32>
    tpu.vector_store %arg19[%c0_79, %c1_80, %c8_81, %c0_82], %112 {strides = array<i32>} : memref<1x4x16x8xf32, #tpu.memory_space<vmem>>, vector<1x1x8x8xf32>,
    %c0_83 = arith.constant 0 : index
    %c1_84 = arith.constant 1 : index
    %c0_85 = arith.constant 0 : index
    %c0_86 = arith.constant 0 : index
    %113 = vector.load %arg18[%c0_83, %c1_84, %c0_85, %c0_86] : memref<1x4x16x8xf32, #tpu.memory_space<vmem>>, vector<1x1x16x8xf32>
    %114 = vector.shape_cast %113 : vector<1x1x16x8xf32> to vector<16x8xf32>
    %c0_87 = arith.constant 0 : index
    %c1_88 = arith.constant 1 : index
    %c0_89 = arith.constant 0 : index
    %c0_90 = arith.constant 0 : index
    %115 = vector.load %arg19[%c0_87, %c1_88, %c0_89, %c0_90] : memref<1x4x16x8xf32, #tpu.memory_space<vmem>>, vector<1x1x16x8xf32>
    %116 = vector.shape_cast %115 : vector<1x1x16x8xf32> to vector<16x8xf32>
    %117 = arith.truncf %94 : vector<8x8xf32> to vector<8x8xbf16>
    %118 = arith.truncf %114 : vector<16x8xf32> to vector<16x8xbf16>
    %cst_91 = arith.constant dense<0.000000e+00> : vector<8x16xf32>
    %119 = tpu.matmul %117, %118, %cst_91 {dimension_numbers = #tpu.dot_dimension_numbers<[1], [1], [0], [0], [0, 0, 1, 0], [], []>} : vector<8x8xbf16>, vector<16x8xbf16>, vector<8x16xf32> -> vector<8x16xf32>
    %120 = arith.addf %119, %48 : vector<8x16xf32>
    %cst_92 = arith.constant dense<0xFF800000> : vector<8xf32>
    %121 = vector.multi_reduction <maximumf>, %120, %cst_92 [1] : vector<8x16xf32> to vector<8xf32>
    %122 = vector.shape_cast %121 : vector<8xf32> to vector<8x1xf32>
    %123 = vector.broadcast %122 : vector<8x1xf32> to vector<8x16xf32>
    %124 = arith.subf %120, %123 : vector<8x16xf32>
    %125 = math.exp %124 : vector<8x16xf32>
    %cst_93 = arith.constant dense<0.000000e+00> : vector<8xf32>
    %126 = vector.multi_reduction <add>, %125, %cst_93 [1] : vector<8x16xf32> to vector<8xf32>
    %127 = vector.shape_cast %126 : vector<8xf32> to vector<8x1xf32>
    %128 = tpu.reciprocal %127 {approx = true} : vector<8x1xf32> -> vector<8x1xf32>
    %129 = vector.broadcast %128 : vector<8x1xf32> to vector<8x16xf32>
    %130 = arith.mulf %125, %129 : vector<8x16xf32>
    %131 = arith.truncf %130 : vector<8x16xf32> to vector<8x16xbf16>
    %132 = arith.truncf %116 : vector<16x8xf32> to vector<16x8xbf16>
    %cst_94 = arith.constant dense<0.000000e+00> : vector<8x8xf32>
    %133 = tpu.matmul %131, %132, %cst_94 {dimension_numbers = #tpu.dot_dimension_numbers<[1], [0], [0], [1], [0, 0, 1, 1], [], []>} : vector<8x16xbf16>, vector<16x8xbf16>, vector<8x8xf32> -> vector<8x8xf32>
    %c0_95 = arith.constant 0 : index
    %c8_96 = arith.constant 8 : index
    %134 = vector.load %arg20[%c0_95, %c8_96] : memref<8x32xf32, #tpu.memory_space<vmem>>, vector<8x8xf32>
    tpu.vector_store %arg20[%c0_95, %c8_96], %133 {strides = array<i32>} : memref<8x32xf32, #tpu.memory_space<vmem>>, vector<8x8xf32>,
    %135 = vector.extract_strided_slice %32 {offsets = [0, 16], sizes = [8, 8], strides = [1, 1]} : vector<8x96xf32> to vector<8x8xf32>
    %cst_97 = arith.constant 0.353553385 : f32
    %136 = vector.broadcast %cst_97 : f32 to vector<8x8xf32>
    %137 = arith.mulf %135, %136 : vector<8x8xf32>
    %138 = vector.extract_strided_slice %32 {offsets = [0, 48], sizes = [8, 8], strides = [1, 1]} : vector<8x96xf32> to vector<8x8xf32>
    %139 = vector.extract_strided_slice %32 {offsets = [0, 80], sizes = [8, 8], strides = [1, 1]} : vector<8x96xf32> to vector<8x8xf32>
    %c0_98 = arith.constant 0 : index
    %c2 = arith.constant 2 : index
    %c0_99 = arith.constant 0 : index
    %c0_100 = arith.constant 0 : index
    %140 = vector.load %arg2[%c0_98, %c2, %c0_99, %c0_100] : memref<1x4x8x8xf32, #tpu.memory_space<vmem>>, vector<1x1x8x8xf32>
    %141 = vector.shape_cast %140 : vector<1x1x8x8xf32> to vector<8x8xf32>
    %c0_101 = arith.constant 0 : index
    %c2_102 = arith.constant 2 : index
    %c0_103 = arith.constant 0 : index
    %c0_104 = arith.constant 0 : index
    %142 = vector.load %arg18[%c0_101, %c2_102, %c0_103, %c0_104] : memref<1x4x16x8xf32, #tpu.memory_space<vmem>>, vector<1x1x8x8xf32>
    %143 = vector.shape_cast %142 : vector<1x1x8x8xf32> to vector<8x8xf32>
    %144 = vector.shape_cast %141 : vector<8x8xf32> to vector<1x1x8x8xf32>
    tpu.vector_store %arg18[%c0_101, %c2_102, %c0_103, %c0_104], %144 {strides = array<i32>} : memref<1x4x16x8xf32, #tpu.memory_space<vmem>>, vector<1x1x8x8xf32>,
    %c0_105 = arith.constant 0 : index
    %c2_106 = arith.constant 2 : index
    %c0_107 = arith.constant 0 : index
    %c0_108 = arith.constant 0 : index
    %145 = vector.load %arg3[%c0_105, %c2_106, %c0_107, %c0_108] : memref<1x4x8x8xf32, #tpu.memory_space<vmem>>, vector<1x1x8x8xf32>
    %146 = vector.shape_cast %145 : vector<1x1x8x8xf32> to vector<8x8xf32>
    %c0_109 = arith.constant 0 : index
    %c2_110 = arith.constant 2 : index
    %c0_111 = arith.constant 0 : index
    %c0_112 = arith.constant 0 : index
    %147 = vector.load %arg19[%c0_109, %c2_110, %c0_111, %c0_112] : memref<1x4x16x8xf32, #tpu.memory_space<vmem>>, vector<1x1x8x8xf32>
    %148 = vector.shape_cast %147 : vector<1x1x8x8xf32> to vector<8x8xf32>
    %149 = vector.shape_cast %146 : vector<8x8xf32> to vector<1x1x8x8xf32>
    tpu.vector_store %arg19[%c0_109, %c2_110, %c0_111, %c0_112], %149 {strides = array<i32>} : memref<1x4x16x8xf32, #tpu.memory_space<vmem>>, vector<1x1x8x8xf32>,
    %c0_113 = arith.constant 0 : index
    %c2_114 = arith.constant 2 : index
    %c8_115 = arith.constant 8 : index
    %c0_116 = arith.constant 0 : index
    %150 = vector.load %arg18[%c0_113, %c2_114, %c8_115, %c0_116] : memref<1x4x16x8xf32, #tpu.memory_space<vmem>>, vector<1x1x8x8xf32>
    %151 = vector.shape_cast %150 : vector<1x1x8x8xf32> to vector<8x8xf32>
    %152 = vector.shape_cast %138 : vector<8x8xf32> to vector<1x1x8x8xf32>
    tpu.vector_store %arg18[%c0_113, %c2_114, %c8_115, %c0_116], %152 {strides = array<i32>} : memref<1x4x16x8xf32, #tpu.memory_space<vmem>>, vector<1x1x8x8xf32>,
    %c0_117 = arith.constant 0 : index
    %c2_118 = arith.constant 2 : index
    %c8_119 = arith.constant 8 : index
    %c0_120 = arith.constant 0 : index
    %153 = vector.load %arg19[%c0_117, %c2_118, %c8_119, %c0_120] : memref<1x4x16x8xf32, #tpu.memory_space<vmem>>, vector<1x1x8x8xf32>
    %154 = vector.shape_cast %153 : vector<1x1x8x8xf32> to vector<8x8xf32>
    %155 = vector.shape_cast %139 : vector<8x8xf32> to vector<1x1x8x8xf32>
    tpu.vector_store %arg19[%c0_117, %c2_118, %c8_119, %c0_120], %155 {strides = array<i32>} : memref<1x4x16x8xf32, #tpu.memory_space<vmem>>, vector<1x1x8x8xf32>,
    %c0_121 = arith.constant 0 : index
    %c2_122 = arith.constant 2 : index
    %c0_123 = arith.constant 0 : index
    %c0_124 = arith.constant 0 : index
    %156 = vector.load %arg18[%c0_121, %c2_122, %c0_123, %c0_124] : memref<1x4x16x8xf32, #tpu.memory_space<vmem>>, vector<1x1x16x8xf32>
    %157 = vector.shape_cast %156 : vector<1x1x16x8xf32> to vector<16x8xf32>
    %c0_125 = arith.constant 0 : index
    %c2_126 = arith.constant 2 : index
    %c0_127 = arith.constant 0 : index
    %c0_128 = arith.constant 0 : index
    %158 = vector.load %arg19[%c0_125, %c2_126, %c0_127, %c0_128] : memref<1x4x16x8xf32, #tpu.memory_space<vmem>>, vector<1x1x16x8xf32>
    %159 = vector.shape_cast %158 : vector<1x1x16x8xf32> to vector<16x8xf32>
    %160 = arith.truncf %137 : vector<8x8xf32> to vector<8x8xbf16>
    %161 = arith.truncf %157 : vector<16x8xf32> to vector<16x8xbf16>
    %cst_129 = arith.constant dense<0.000000e+00> : vector<8x16xf32>
    %162 = tpu.matmul %160, %161, %cst_129 {dimension_numbers = #tpu.dot_dimension_numbers<[1], [1], [0], [0], [0, 0, 1, 0], [], []>} : vector<8x8xbf16>, vector<16x8xbf16>, vector<8x16xf32> -> vector<8x16xf32>
    %163 = arith.addf %162, %48 : vector<8x16xf32>
    %cst_130 = arith.constant dense<0xFF800000> : vector<8xf32>
    %164 = vector.multi_reduction <maximumf>, %163, %cst_130 [1] : vector<8x16xf32> to vector<8xf32>
    %165 = vector.shape_cast %164 : vector<8xf32> to vector<8x1xf32>
    %166 = vector.broadcast %165 : vector<8x1xf32> to vector<8x16xf32>
    %167 = arith.subf %163, %166 : vector<8x16xf32>
    %168 = math.exp %167 : vector<8x16xf32>
    %cst_131 = arith.constant dense<0.000000e+00> : vector<8xf32>
    %169 = vector.multi_reduction <add>, %168, %cst_131 [1] : vector<8x16xf32> to vector<8xf32>
    %170 = vector.shape_cast %169 : vector<8xf32> to vector<8x1xf32>
    %171 = tpu.reciprocal %170 {approx = true} : vector<8x1xf32> -> vector<8x1xf32>
    %172 = vector.broadcast %171 : vector<8x1xf32> to vector<8x16xf32>
    %173 = arith.mulf %168, %172 : vector<8x16xf32>
    %174 = arith.truncf %173 : vector<8x16xf32> to vector<8x16xbf16>
    %175 = arith.truncf %159 : vector<16x8xf32> to vector<16x8xbf16>
    %cst_132 = arith.constant dense<0.000000e+00> : vector<8x8xf32>
    %176 = tpu.matmul %174, %175, %cst_132 {dimension_numbers = #tpu.dot_dimension_numbers<[1], [0], [0], [1], [0, 0, 1, 1], [], []>} : vector<8x16xbf16>, vector<16x8xbf16>, vector<8x8xf32> -> vector<8x8xf32>
    %c0_133 = arith.constant 0 : index
    %c16 = arith.constant 16 : index
    %177 = vector.load %arg20[%c0_133, %c16] : memref<8x32xf32, #tpu.memory_space<vmem>>, vector<8x8xf32>
    tpu.vector_store %arg20[%c0_133, %c16], %176 {strides = array<i32>} : memref<8x32xf32, #tpu.memory_space<vmem>>, vector<8x8xf32>,
    %178 = vector.extract_strided_slice %32 {offsets = [0, 24], sizes = [8, 8], strides = [1, 1]} : vector<8x96xf32> to vector<8x8xf32>
    %cst_134 = arith.constant 0.353553385 : f32
    %179 = vector.broadcast %cst_134 : f32 to vector<8x8xf32>
    %180 = arith.mulf %178, %179 : vector<8x8xf32>
    %181 = vector.extract_strided_slice %32 {offsets = [0, 56], sizes = [8, 8], strides = [1, 1]} : vector<8x96xf32> to vector<8x8xf32>
    %182 = vector.extract_strided_slice %32 {offsets = [0, 88], sizes = [8, 8], strides = [1, 1]} : vector<8x96xf32> to vector<8x8xf32>
    %c0_135 = arith.constant 0 : index
    %c3 = arith.constant 3 : index
    %c0_136 = arith.constant 0 : index
    %c0_137 = arith.constant 0 : index
    %183 = vector.load %arg2[%c0_135, %c3, %c0_136, %c0_137] : memref<1x4x8x8xf32, #tpu.memory_space<vmem>>, vector<1x1x8x8xf32>
    %184 = vector.shape_cast %183 : vector<1x1x8x8xf32> to vector<8x8xf32>
    %c0_138 = arith.constant 0 : index
    %c3_139 = arith.constant 3 : index
    %c0_140 = arith.constant 0 : index
    %c0_141 = arith.constant 0 : index
    %185 = vector.load %arg18[%c0_138, %c3_139, %c0_140, %c0_141] : memref<1x4x16x8xf32, #tpu.memory_space<vmem>>, vector<1x1x8x8xf32>
    %186 = vector.shape_cast %185 : vector<1x1x8x8xf32> to vector<8x8xf32>
    %187 = vector.shape_cast %184 : vector<8x8xf32> to vector<1x1x8x8xf32>
    tpu.vector_store %arg18[%c0_138, %c3_139, %c0_140, %c0_141], %187 {strides = array<i32>} : memref<1x4x16x8xf32, #tpu.memory_space<vmem>>, vector<1x1x8x8xf32>,
    %c0_142 = arith.constant 0 : index
    %c3_143 = arith.constant 3 : index
    %c0_144 = arith.constant 0 : index
    %c0_145 = arith.constant 0 : index
    %188 = vector.load %arg3[%c0_142, %c3_143, %c0_144, %c0_145] : memref<1x4x8x8xf32, #tpu.memory_space<vmem>>, vector<1x1x8x8xf32>
    %189 = vector.shape_cast %188 : vector<1x1x8x8xf32> to vector<8x8xf32>
    %c0_146 = arith.constant 0 : index
    %c3_147 = arith.constant 3 : index
    %c0_148 = arith.constant 0 : index
    %c0_149 = arith.constant 0 : index
    %190 = vector.load %arg19[%c0_146, %c3_147, %c0_148, %c0_149] : memref<1x4x16x8xf32, #tpu.memory_space<vmem>>, vector<1x1x8x8xf32>
    %191 = vector.shape_cast %190 : vector<1x1x8x8xf32> to vector<8x8xf32>
    %192 = vector.shape_cast %189 : vector<8x8xf32> to vector<1x1x8x8xf32>
    tpu.vector_store %arg19[%c0_146, %c3_147, %c0_148, %c0_149], %192 {strides = array<i32>} : memref<1x4x16x8xf32, #tpu.memory_space<vmem>>, vector<1x1x8x8xf32>,
    %c0_150 = arith.constant 0 : index
    %c3_151 = arith.constant 3 : index
    %c8_152 = arith.constant 8 : index
    %c0_153 = arith.constant 0 : index
    %193 = vector.load %arg18[%c0_150, %c3_151, %c8_152, %c0_153] : memref<1x4x16x8xf32, #tpu.memory_space<vmem>>, vector<1x1x8x8xf32>
    %194 = vector.shape_cast %193 : vector<1x1x8x8xf32> to vector<8x8xf32>
    %195 = vector.shape_cast %181 : vector<8x8xf32> to vector<1x1x8x8xf32>
    tpu.vector_store %arg18[%c0_150, %c3_151, %c8_152, %c0_153], %195 {strides = array<i32>} : memref<1x4x16x8xf32, #tpu.memory_space<vmem>>, vector<1x1x8x8xf32>,
    %c0_154 = arith.constant 0 : index
    %c3_155 = arith.constant 3 : index
    %c8_156 = arith.constant 8 : index
    %c0_157 = arith.constant 0 : index
    %196 = vector.load %arg19[%c0_154, %c3_155, %c8_156, %c0_157] : memref<1x4x16x8xf32, #tpu.memory_space<vmem>>, vector<1x1x8x8xf32>
    %197 = vector.shape_cast %196 : vector<1x1x8x8xf32> to vector<8x8xf32>
    %198 = vector.shape_cast %182 : vector<8x8xf32> to vector<1x1x8x8xf32>
    tpu.vector_store %arg19[%c0_154, %c3_155, %c8_156, %c0_157], %198 {strides = array<i32>} : memref<1x4x16x8xf32, #tpu.memory_space<vmem>>, vector<1x1x8x8xf32>,
    %c0_158 = arith.constant 0 : index
    %c3_159 = arith.constant 3 : index
    %c0_160 = arith.constant 0 : index
    %c0_161 = arith.constant 0 : index
    %199 = vector.load %arg18[%c0_158, %c3_159, %c0_160, %c0_161] : memref<1x4x16x8xf32, #tpu.memory_space<vmem>>, vector<1x1x16x8xf32>
    %200 = vector.shape_cast %199 : vector<1x1x16x8xf32> to vector<16x8xf32>
    %c0_162 = arith.constant 0 : index
    %c3_163 = arith.constant 3 : index
    %c0_164 = arith.constant 0 : index
    %c0_165 = arith.constant 0 : index
    %201 = vector.load %arg19[%c0_162, %c3_163, %c0_164, %c0_165] : memref<1x4x16x8xf32, #tpu.memory_space<vmem>>, vector<1x1x16x8xf32>
    %202 = vector.shape_cast %201 : vector<1x1x16x8xf32> to vector<16x8xf32>
    %203 = arith.truncf %180 : vector<8x8xf32> to vector<8x8xbf16>
    %204 = arith.truncf %200 : vector<16x8xf32> to vector<16x8xbf16>
    %cst_166 = arith.constant dense<0.000000e+00> : vector<8x16xf32>
    %205 = tpu.matmul %203, %204, %cst_166 {dimension_numbers = #tpu.dot_dimension_numbers<[1], [1], [0], [0], [0, 0, 1, 0], [], []>} : vector<8x8xbf16>, vector<16x8xbf16>, vector<8x16xf32> -> vector<8x16xf32>
    %206 = arith.addf %205, %48 : vector<8x16xf32>
    %cst_167 = arith.constant dense<0xFF800000> : vector<8xf32>
    %207 = vector.multi_reduction <maximumf>, %206, %cst_167 [1] : vector<8x16xf32> to vector<8xf32>
    %208 = vector.shape_cast %207 : vector<8xf32> to vector<8x1xf32>
    %209 = vector.broadcast %208 : vector<8x1xf32> to vector<8x16xf32>
    %210 = arith.subf %206, %209 : vector<8x16xf32>
    %211 = math.exp %210 : vector<8x16xf32>
    %cst_168 = arith.constant dense<0.000000e+00> : vector<8xf32>
    %212 = vector.multi_reduction <add>, %211, %cst_168 [1] : vector<8x16xf32> to vector<8xf32>
    %213 = vector.shape_cast %212 : vector<8xf32> to vector<8x1xf32>
    %214 = tpu.reciprocal %213 {approx = true} : vector<8x1xf32> -> vector<8x1xf32>
    %215 = vector.broadcast %214 : vector<8x1xf32> to vector<8x16xf32>
    %216 = arith.mulf %211, %215 : vector<8x16xf32>
    %217 = arith.truncf %216 : vector<8x16xf32> to vector<8x16xbf16>
    %218 = arith.truncf %202 : vector<16x8xf32> to vector<16x8xbf16>
    %cst_169 = arith.constant dense<0.000000e+00> : vector<8x8xf32>
    %219 = tpu.matmul %217, %218, %cst_169 {dimension_numbers = #tpu.dot_dimension_numbers<[1], [0], [0], [1], [0, 0, 1, 1], [], []>} : vector<8x16xbf16>, vector<16x8xbf16>, vector<8x8xf32> -> vector<8x8xf32>
    %c0_170 = arith.constant 0 : index
    %c24 = arith.constant 24 : index
    %220 = vector.load %arg20[%c0_170, %c24] : memref<8x32xf32, #tpu.memory_space<vmem>>, vector<8x8xf32>
    tpu.vector_store %arg20[%c0_170, %c24], %219 {strides = array<i32>} : memref<8x32xf32, #tpu.memory_space<vmem>>, vector<8x8xf32>,
    %c0_171 = arith.constant 0 : index
    %c0_172 = arith.constant 0 : index
    %221 = vector.load %arg20[%c0_171, %c0_172] : memref<8x32xf32, #tpu.memory_space<vmem>>, vector<8x32xf32>
    %222 = arith.truncf %221 : vector<8x32xf32> to vector<8x32xbf16>
    %c0_173 = arith.constant 0 : index
    %c0_174 = arith.constant 0 : index
    %223 = vector.load %arg9[%c0_173, %c0_174] : memref<32x32xbf16, #tpu.memory_space<vmem>>, vector<32x32xbf16>
    %cst_175 = arith.constant dense<0.000000e+00> : vector<8x32xf32>
    %224 = tpu.matmul %222, %223, %cst_175 {dimension_numbers = #tpu.dot_dimension_numbers<[1], [0], [0], [1], [0, 0, 1, 1], [], []>} : vector<8x32xbf16>, vector<32x32xbf16>, vector<8x32xf32> -> vector<8x32xf32>
    %c0_176 = arith.constant 0 : index
    %c0_177 = arith.constant 0 : index
    %225 = vector.load %arg10[%c0_176, %c0_177] : memref<1x32xf32, #tpu.memory_space<vmem>>, vector<1x32xf32>
    %226 = vector.broadcast %225 : vector<1x32xf32> to vector<8x32xf32>
    %227 = arith.addf %224, %226 : vector<8x32xf32>
    %228 = arith.addf %0, %227 : vector<8x32xf32>
    %cst_178 = arith.constant dense<0.000000e+00> : vector<8xf32>
    %229 = vector.multi_reduction <add>, %228, %cst_178 [1] : vector<8x32xf32> to vector<8xf32>
    %230 = vector.shape_cast %229 : vector<8xf32> to vector<8x1xf32>
    %cst_179 = arith.constant 3.200000e+01 : f32
    %231 = vector.broadcast %cst_179 : f32 to vector<8x1xf32>
    %232 = arith.divf %230, %231 : vector<8x1xf32>
    %233 = vector.broadcast %232 : vector<8x1xf32> to vector<8x32xf32>
    %234 = arith.subf %228, %233 : vector<8x32xf32>
    %235 = vector.broadcast %232 : vector<8x1xf32> to vector<8x32xf32>
    %236 = arith.subf %228, %235 : vector<8x32xf32>
    %237 = arith.mulf %234, %236 : vector<8x32xf32>
    %cst_180 = arith.constant dense<0.000000e+00> : vector<8xf32>
    %238 = vector.multi_reduction <add>, %237, %cst_180 [1] : vector<8x32xf32> to vector<8xf32>
    %239 = vector.shape_cast %238 : vector<8xf32> to vector<8x1xf32>
    %cst_181 = arith.constant 3.200000e+01 : f32
    %240 = vector.broadcast %cst_181 : f32 to vector<8x1xf32>
    %241 = arith.divf %239, %240 : vector<8x1xf32>
    %242 = vector.broadcast %232 : vector<8x1xf32> to vector<8x32xf32>
    %243 = arith.subf %228, %242 : vector<8x32xf32>
    %cst_182 = arith.constant 9.99999974E-6 : f32
    %244 = vector.broadcast %cst_182 : f32 to vector<8x1xf32>
    %245 = arith.addf %241, %244 : vector<8x1xf32>
    %246 = math.rsqrt %245 : vector<8x1xf32>
    %247 = vector.broadcast %246 : vector<8x1xf32> to vector<8x32xf32>
    %248 = arith.mulf %243, %247 : vector<8x32xf32>
    %c0_183 = arith.constant 0 : index
    %c0_184 = arith.constant 0 : index
    %249 = vector.load %arg11[%c0_183, %c0_184] : memref<1x32xf32, #tpu.memory_space<vmem>>, vector<1x32xf32>
    %250 = vector.broadcast %249 : vector<1x32xf32> to vector<8x32xf32>
    %251 = arith.mulf %248, %250 : vector<8x32xf32>
    %c0_185 = arith.constant 0 : index
    %c0_186 = arith.constant 0 : index
    %252 = vector.load %arg12[%c0_185, %c0_186] : memref<1x32xf32, #tpu.memory_space<vmem>>, vector<1x32xf32>
    %253 = vector.broadcast %252 : vector<1x32xf32> to vector<8x32xf32>
    %254 = arith.addf %251, %253 : vector<8x32xf32>
    %255 = arith.truncf %254 : vector<8x32xf32> to vector<8x32xbf16>
    %c0_187 = arith.constant 0 : index
    %c0_188 = arith.constant 0 : index
    %256 = vector.load %arg13[%c0_187, %c0_188] : memref<32x128xbf16, #tpu.memory_space<vmem>>, vector<32x128xbf16>
    %cst_189 = arith.constant dense<0.000000e+00> : vector<8x128xf32>
    %257 = tpu.matmul %255, %256, %cst_189 {dimension_numbers = #tpu.dot_dimension_numbers<[1], [0], [0], [1], [0, 0, 1, 1], [], []>} : vector<8x32xbf16>, vector<32x128xbf16>, vector<8x128xf32> -> vector<8x128xf32>
    %c0_190 = arith.constant 0 : index
    %c0_191 = arith.constant 0 : index
    %258 = vector.load %arg14[%c0_190, %c0_191] : memref<1x128xf32, #tpu.memory_space<vmem>>, vector<1x128xf32>
    %259 = vector.broadcast %258 : vector<1x128xf32> to vector<8x128xf32>
    %260 = arith.addf %257, %259 : vector<8x128xf32>
    %cst_192 = arith.constant 5.000000e-01 : f32
    %261 = vector.broadcast %cst_192 : f32 to vector<8x128xf32>
    %262 = arith.mulf %261, %260 : vector<8x128xf32>
    %cst_193 = arith.constant 4.471500e-02 : f32
    %263 = vector.broadcast %cst_193 : f32 to vector<8x128xf32>
    %264 = arith.mulf %263, %260 : vector<8x128xf32>
    %265 = arith.mulf %264, %260 : vector<8x128xf32>
    %266 = arith.mulf %265, %260 : vector<8x128xf32>
    %267 = arith.addf %260, %266 : vector<8x128xf32>
    %cst_194 = arith.constant 0.797884583 : f32
    %268 = vector.broadcast %cst_194 : f32 to vector<8x128xf32>
    %269 = arith.mulf %268, %267 : vector<8x128xf32>
    %270 = math.tanh %269 : vector<8x128xf32>
    %cst_195 = arith.constant 1.000000e+00 : f32
    %271 = vector.broadcast %cst_195 : f32 to vector<8x128xf32>
    %272 = arith.addf %271, %270 : vector<8x128xf32>
    %273 = arith.mulf %262, %272 : vector<8x128xf32>
    %274 = arith.truncf %273 : vector<8x128xf32> to vector<8x128xbf16>
    %c0_196 = arith.constant 0 : index
    %c0_197 = arith.constant 0 : index
    %275 = vector.load %arg15[%c0_196, %c0_197] : memref<128x32xbf16, #tpu.memory_space<vmem>>, vector<128x32xbf16>
    %cst_198 = arith.constant dense<0.000000e+00> : vector<8x32xf32>
    %276 = tpu.matmul %274, %275, %cst_198 {dimension_numbers = #tpu.dot_dimension_numbers<[1], [0], [0], [1], [0, 0, 1, 1], [], []>} : vector<8x128xbf16>, vector<128x32xbf16>, vector<8x32xf32> -> vector<8x32xf32>
    %c0_199 = arith.constant 0 : index
    %c0_200 = arith.constant 0 : index
    %277 = vector.load %arg16[%c0_199, %c0_200] : memref<1x32xf32, #tpu.memory_space<vmem>>, vector<1x32xf32>
    %278 = vector.broadcast %277 : vector<1x32xf32> to vector<8x32xf32>
    %279 = arith.addf %276, %278 : vector<8x32xf32>
    %280 = arith.addf %228, %279 : vector<8x32xf32>
    %c0_201 = arith.constant 0 : index
    %c0_202 = arith.constant 0 : index
    %281 = vector.load %arg17[%c0_201, %c0_202] : memref<8x32xf32, #tpu.memory_space<vmem>>, vector<8x32xf32>
    tpu.vector_store %arg17[%c0_201, %c0_202], %280 {strides = array<i32>} : memref<8x32xf32, #tpu.memory_space<vmem>>, vector<8x32xf32>,
    return
  }
  func.func @transform_0(%arg0: i32) -> (i32, i32) {
    %c0_i32 = arith.constant 0 : i32
    %c0_i32_0 = arith.constant 0 : i32
    return %arg0, %c0_i32 : i32, i32
  }
  func.func @transform_1(%arg0: i32) -> (i32, i32, i32, i32) {
    %c0_i32 = arith.constant 0 : i32
    %c0_i32_0 = arith.constant 0 : i32
    %c0_i32_1 = arith.constant 0 : i32
    %c0_i32_2 = arith.constant 0 : i32
    return %arg0, %c0_i32, %c0_i32_0, %c0_i32_1 : i32, i32, i32, i32
  }
  func.func @transform_2(%arg0: i32) -> (i32, i32, i32, i32) {
    %c0_i32 = arith.constant 0 : i32
    %c0_i32_0 = arith.constant 0 : i32
    %c0_i32_1 = arith.constant 0 : i32
    %c0_i32_2 = arith.constant 0 : i32
    return %arg0, %c0_i32, %c0_i32_0, %c0_i32_1 : i32, i32, i32, i32
  }
  func.func @transform_3(%arg0: i32) -> (i32, i32, i32) {
    %c0_i32 = arith.constant 0 : i32
    %c0_i32_0 = arith.constant 0 : i32
    %c0_i32_1 = arith.constant 0 : i32
    return %arg0, %c0_i32, %c0_i32_0 : i32, i32, i32
  }
  func.func @transform_4(%arg0: i32) -> (i32, i32) {
    %c0_i32 = arith.constant 0 : i32
    %c0_i32_0 = arith.constant 0 : i32
    %c0_i32_1 = arith.constant 0 : i32
    return %c0_i32, %c0_i32_0 : i32, i32
  }
  func.func @transform_5(%arg0: i32) -> (i32, i32) {
    %c0_i32 = arith.constant 0 : i32
    %c0_i32_0 = arith.constant 0 : i32
    %c0_i32_1 = arith.constant 0 : i32
    return %c0_i32, %c0_i32_0 : i32, i32
  }
  func.func @transform_6(%arg0: i32) -> (i32, i32) {
    %c0_i32 = arith.constant 0 : i32
    %c0_i32_0 = arith.constant 0 : i32
    %c0_i32_1 = arith.constant 0 : i32
    return %c0_i32, %c0_i32_0 : i32, i32
  }
  func.func @transform_7(%arg0: i32) -> (i32, i32) {
    %c0_i32 = arith.constant 0 : i32
    %c0_i32_0 = arith.constant 0 : i32
    %c0_i32_1 = arith.constant 0 : i32
    return %c0_i32, %c0_i32_0 : i32, i32
  }
  func.func @transform_8(%arg0: i32) -> (i32, i32) {
    %c0_i32 = arith.constant 0 : i32
    %c0_i32_0 = arith.constant 0 : i32
    %c0_i32_1 = arith.constant 0 : i32
    return %c0_i32, %c0_i32_0 : i32, i32
  }
  func.func @transform_9(%arg0: i32) -> (i32, i32) {
    %c0_i32 = arith.constant 0 : i32
    %c0_i32_0 = arith.constant 0 : i32
    %c0_i32_1 = arith.constant 0 : i32
    return %c0_i32, %c0_i32_0 : i32, i32
  }
  func.func @transform_10(%arg0: i32) -> (i32, i32) {
    %c0_i32 = arith.constant 0 : i32
    %c0_i32_0 = arith.constant 0 : i32
    %c0_i32_1 = arith.constant 0 : i32
    return %c0_i32, %c0_i32_0 : i32, i32
  }
  func.func @transform_11(%arg0: i32) -> (i32, i32) {
    %c0_i32 = arith.constant 0 : i32
    %c0_i32_0 = arith.constant 0 : i32
    %c0_i32_1 = arith.constant 0 : i32
    return %c0_i32, %c0_i32_0 : i32, i32
  }
  func.func @transform_12(%arg0: i32) -> (i32, i32) {
    %c0_i32 = arith.constant 0 : i32
    %c0_i32_0 = arith.constant 0 : i32
    %c0_i32_1 = arith.constant 0 : i32
    return %c0_i32, %c0_i32_0 : i32, i32
  }
  func.func @transform_13(%arg0: i32) -> (i32, i32) {
    %c0_i32 = arith.constant 0 : i32
    %c0_i32_0 = arith.constant 0 : i32
    %c0_i32_1 = arith.constant 0 : i32
    return %c0_i32, %c0_i32_0 : i32, i32
  }
  func.func @transform_14(%arg0: i32) -> (i32, i32) {
    %c0_i32 = arith.constant 0 : i32
    %c0_i32_0 = arith.constant 0 : i32
    %c0_i32_1 = arith.constant 0 : i32
    return %c0_i32, %c0_i32_0 : i32, i32
  }
  func.func @transform_15(%arg0: i32) -> (i32, i32) {
    %c0_i32 = arith.constant 0 : i32
    %c0_i32_0 = arith.constant 0 : i32
    %c0_i32_1 = arith.constant 0 : i32
    return %c0_i32, %c0_i32_0 : i32, i32
  }
  func.func @transform_16(%arg0: i32) -> (i32, i32) {
    %c0_i32 = arith.constant 0 : i32
    %c0_i32_0 = arith.constant 0 : i32
    return %arg0, %c0_i32 : i32, i32
  }
  func.func @transform_17(%arg0: i32) -> (i32, i32, i32, i32) {
    %c0_i32 = arith.constant 0 : i32
    %c0_i32_0 = arith.constant 0 : i32
    %c0_i32_1 = arith.constant 0 : i32
    %c0_i32_2 = arith.constant 0 : i32
    return %arg0, %c0_i32, %c0_i32_0, %c0_i32_1 : i32, i32, i32, i32
  }
  func.func @transform_18(%arg0: i32) -> (i32, i32, i32, i32) {
    %c0_i32 = arith.constant 0 : i32
    %c0_i32_0 = arith.constant 0 : i32
    %c0_i32_1 = arith.constant 0 : i32
    %c0_i32_2 = arith.constant 0 : i32
    return %arg0, %c0_i32, %c0_i32_0, %c0_i32_1 : i32, i32, i32, i32
  }
}

module attributes {stable_mosaic.version = 11 : i64} {
  func.func @_ln_linear_kernel(%arg0: i32, %arg1: memref<16x32xf32, #tpu.memory_space<vmem>>, %arg2: memref<1x32xf32, #tpu.memory_space<vmem>>, %arg3: memref<1x32xf32, #tpu.memory_space<vmem>>, %arg4: memref<64x32xbf16, #tpu.memory_space<vmem>>, %arg5: memref<1x64xf32, #tpu.memory_space<vmem>>, %arg6: memref<16x64xf32, #tpu.memory_space<vmem>>) attributes {dimension_semantics = [#tpu.dimension_semantics<parallel>], iteration_bounds = array<i64: 1>, scalar_prefetch = 0 : i64, scratch_operands = 0 : i64, tpu.core_type = #tpu.core_type<tc>, window_params = [{transform_indices = @transform_0, window_bounds = array<i64: 16, 32>}, {pipeline_mode = #tpu.pipeline_mode<synchronous>, transform_indices = @transform_1, window_bounds = array<i64: 1, 32>}, {pipeline_mode = #tpu.pipeline_mode<synchronous>, transform_indices = @transform_2, window_bounds = array<i64: 1, 32>}, {pipeline_mode = #tpu.pipeline_mode<synchronous>, transform_indices = @transform_3, window_bounds = array<i64: 64, 32>}, {pipeline_mode = #tpu.pipeline_mode<synchronous>, transform_indices = @transform_4, window_bounds = array<i64: 1, 64>}, {transform_indices = @transform_5, window_bounds = array<i64: 16, 64>}]} {
    %c0 = arith.constant 0 : index
    %c0_0 = arith.constant 0 : index
    %0 = vector.load %arg1[%c0, %c0_0] : memref<16x32xf32, #tpu.memory_space<vmem>>, vector<16x32xf32>
    %cst = arith.constant dense<0.000000e+00> : vector<16xf32>
    %1 = vector.multi_reduction <add>, %0, %cst [1] : vector<16x32xf32> to vector<16xf32>
    %2 = vector.shape_cast %1 : vector<16xf32> to vector<16x1xf32>
    %cst_1 = arith.constant 3.200000e+01 : f32
    %3 = vector.broadcast %cst_1 : f32 to vector<16x1xf32>
    %4 = arith.divf %2, %3 : vector<16x1xf32>
    %5 = vector.broadcast %4 : vector<16x1xf32> to vector<16x32xf32>
    %6 = arith.subf %0, %5 : vector<16x32xf32>
    %7 = vector.broadcast %4 : vector<16x1xf32> to vector<16x32xf32>
    %8 = arith.subf %0, %7 : vector<16x32xf32>
    %9 = arith.mulf %6, %8 : vector<16x32xf32>
    %cst_2 = arith.constant dense<0.000000e+00> : vector<16xf32>
    %10 = vector.multi_reduction <add>, %9, %cst_2 [1] : vector<16x32xf32> to vector<16xf32>
    %11 = vector.shape_cast %10 : vector<16xf32> to vector<16x1xf32>
    %cst_3 = arith.constant 3.200000e+01 : f32
    %12 = vector.broadcast %cst_3 : f32 to vector<16x1xf32>
    %13 = arith.divf %11, %12 : vector<16x1xf32>
    %14 = vector.broadcast %4 : vector<16x1xf32> to vector<16x32xf32>
    %15 = arith.subf %0, %14 : vector<16x32xf32>
    %cst_4 = arith.constant 9.99999974E-6 : f32
    %16 = vector.broadcast %cst_4 : f32 to vector<16x1xf32>
    %17 = arith.addf %13, %16 : vector<16x1xf32>
    %18 = math.rsqrt %17 : vector<16x1xf32>
    %19 = vector.broadcast %18 : vector<16x1xf32> to vector<16x32xf32>
    %20 = arith.mulf %15, %19 : vector<16x32xf32>
    %c0_5 = arith.constant 0 : index
    %c0_6 = arith.constant 0 : index
    %21 = vector.load %arg2[%c0_5, %c0_6] : memref<1x32xf32, #tpu.memory_space<vmem>>, vector<1x32xf32>
    %22 = vector.broadcast %21 : vector<1x32xf32> to vector<16x32xf32>
    %23 = arith.mulf %20, %22 : vector<16x32xf32>
    %c0_7 = arith.constant 0 : index
    %c0_8 = arith.constant 0 : index
    %24 = vector.load %arg3[%c0_7, %c0_8] : memref<1x32xf32, #tpu.memory_space<vmem>>, vector<1x32xf32>
    %25 = vector.broadcast %24 : vector<1x32xf32> to vector<16x32xf32>
    %26 = arith.addf %23, %25 : vector<16x32xf32>
    %27 = arith.truncf %26 : vector<16x32xf32> to vector<16x32xbf16>
    %c0_9 = arith.constant 0 : index
    %c0_10 = arith.constant 0 : index
    %28 = vector.load %arg4[%c0_9, %c0_10] : memref<64x32xbf16, #tpu.memory_space<vmem>>, vector<64x32xbf16>
    %cst_11 = arith.constant dense<0.000000e+00> : vector<16x64xf32>
    %29 = tpu.matmul %27, %28, %cst_11 {dimension_numbers = #tpu.dot_dimension_numbers<[1], [1], [0], [0], [0, 0, 1, 0], [], []>} : vector<16x32xbf16>, vector<64x32xbf16>, vector<16x64xf32> -> vector<16x64xf32>
    %c0_12 = arith.constant 0 : index
    %c0_13 = arith.constant 0 : index
    %30 = vector.load %arg5[%c0_12, %c0_13] : memref<1x64xf32, #tpu.memory_space<vmem>>, vector<1x64xf32>
    %31 = vector.broadcast %30 : vector<1x64xf32> to vector<16x64xf32>
    %32 = arith.addf %29, %31 : vector<16x64xf32>
    %c0_14 = arith.constant 0 : index
    %c0_15 = arith.constant 0 : index
    %33 = vector.load %arg6[%c0_14, %c0_15] : memref<16x64xf32, #tpu.memory_space<vmem>>, vector<16x64xf32>
    tpu.vector_store %arg6[%c0_14, %c0_15], %32 {strides = array<i32>} : memref<16x64xf32, #tpu.memory_space<vmem>>, vector<16x64xf32>,
    return
  }
  func.func @transform_0(%arg0: i32) -> (i32, i32) {
    %c0_i32 = arith.constant 0 : i32
    %c0_i32_0 = arith.constant 0 : i32
    return %arg0, %c0_i32 : i32, i32
  }
  func.func @transform_1(%arg0: i32) -> (i32, i32) {
    %c0_i32 = arith.constant 0 : i32
    %c0_i32_0 = arith.constant 0 : i32
    %c0_i32_1 = arith.constant 0 : i32
    return %c0_i32, %c0_i32_0 : i32, i32
  }
  func.func @transform_2(%arg0: i32) -> (i32, i32) {
    %c0_i32 = arith.constant 0 : i32
    %c0_i32_0 = arith.constant 0 : i32
    %c0_i32_1 = arith.constant 0 : i32
    return %c0_i32, %c0_i32_0 : i32, i32
  }
  func.func @transform_3(%arg0: i32) -> (i32, i32) {
    %c0_i32 = arith.constant 0 : i32
    %c0_i32_0 = arith.constant 0 : i32
    %c0_i32_1 = arith.constant 0 : i32
    return %c0_i32, %c0_i32_0 : i32, i32
  }
  func.func @transform_4(%arg0: i32) -> (i32, i32) {
    %c0_i32 = arith.constant 0 : i32
    %c0_i32_0 = arith.constant 0 : i32
    %c0_i32_1 = arith.constant 0 : i32
    return %c0_i32, %c0_i32_0 : i32, i32
  }
  func.func @transform_5(%arg0: i32) -> (i32, i32) {
    %c0_i32 = arith.constant 0 : i32
    %c0_i32_0 = arith.constant 0 : i32
    return %arg0, %c0_i32 : i32, i32
  }
}

</mosaic_0001>

<llo_original>
// kernel: wrapper_forward.5
$region0: #{wrapper_forward.5}
  #allocation0 [shape = 'u32[]', space=smem, size = 0x4, offset = 0x4, fixed_abs, tag = 'smem constant byte address 0x4 - core index']
  #allocation1 [shape = 'u32[72,128]{1,0:T(1,128)}', space=vmem, size = 0x9000, scoped, tag = 'internal scratch']
  %s0 = inlined_call_operand.vmem [shape: f32[16,32], index: 0, kind: input, shape index: {}]
  %s1 = inlined_call_operand.vmem [shape: f32[1,32], index: 1, kind: input, shape index: {}]
  %s2 = inlined_call_operand.vmem [shape: f32[1,32], index: 2, kind: input, shape index: {}]
  %s3 = inlined_call_operand.vmem [shape: bf16[64,32], index: 3, kind: input, shape index: {}]
  %s4 = inlined_call_operand.vmem [shape: f32[1,64], index: 4, kind: input, shape index: {}]
  %s5 = inlined_call_operand.hbm [shape: f32[16,64], index: 5, kind: output, shape index: {}]
  %s6 = sld [smem:[#allocation0]]
  $region30: #{wrapper_forward.5} parent=0
    _
  %s8 = ssub.s32 1, %s6
  %s9 = scalar_select 0, %s8, %s6
  $region1: #{wrapper_forward.5} parent=0
    #allocation2 [shape = 'u8[8192]{0}', space=vmem, size = 0x2000, scoped, tag = 'output window, operand 0, single buffered']
    #allocation3 [shape = 's32[1]{0}', space=sflag, size = 0x4, scoped, tag = 'scoped memory for wrapper_forward.5']
    %10 = vsyncpa [#allocation3], 0
    // Predicated region
    $region2: #{wrapper_forward.5} parent=1 // pred_check
      _
    $region3: #{wrapper_forward.5} parent=1 // pred_check_branch
      %12 = sbr.rel (0) target = $region5
    $region4: #{wrapper_forward.5} parent=1 // pred_region
      _
    $region5: #{wrapper_forward.5} parent=1 // pred_fallthru
      _
    // Predicated region
    $region6: #{wrapper_forward.5} parent=1 // pred_check
      _
    $region7: #{wrapper_forward.5} parent=1 // pred_check_branch
      %14 = sbr.rel (0) target = $region9
    $region8: #{wrapper_forward.5} parent=1 // pred_region
      _
    $region9: #{wrapper_forward.5} parent=1 // pred_fallthru
      _
    // Predicated region
    $region10: #{wrapper_forward.5} parent=1 // pred_check
      _
    $region11: #{wrapper_forward.5} parent=1 // pred_check_branch
      %16 = sbr.rel (0) target = $region13
    $region12: #{wrapper_forward.5} parent=1 // pred_region
      _
    $region13: #{wrapper_forward.5} parent=1 // pred_fallthru
      _
    // Predicated region
    $region14: #{wrapper_forward.5} parent=1 // pred_check
      _
    $region15: #{wrapper_forward.5} parent=1 // pred_check_branch
      %18 = sbr.rel (0) target = $region17
    $region16: #{wrapper_forward.5} parent=1 // pred_region
      _
    $region17: #{wrapper_forward.5} parent=1 // pred_fallthru
      _
    // Predicated region
    $region18: #{wrapper_forward.5} parent=1 // pred_check
      _
    $region19: #{wrapper_forward.5} parent=1 // pred_check_branch
      %20 = sbr.rel (0) target = $region21
    $region20: #{wrapper_forward.5} parent=1 // pred_region
      _
    $region21: #{wrapper_forward.5} parent=1 // pred_fallthru
      _
    %v22 = vld [vmem:[%s0] sm:$0xff]
    %v23 = vld [vmem:[%s0 + $0x8] sm:$0xff]
    %vm24 = vcmask 261120
    %v25 = vsel %vm24, %v22, 0.0
    %26 = vadd.xlane.f32.xlu0 %v25
    %v27 = vpop.xlane.xlu0 %26
    %v28 = vsel %vm24, %v23, 0.0
    %29 = vadd.xlane.f32.xlu0 %v28
    %v30 = vpop.xlane.xlu0 %29
    %v31 = vrcp.pop 32.0
    %v32 = vmul.f32 32.0, %v31
    %v33 = vsub.f32 1.0, %v32
    %v34 = vmul.f32 %v31, %v33
    %v35 = vadd.f32 %v31, %v34
    %vm36 = vweird.f32 %v31
    %v37 = vsel %vm36, %v31, %v35
    %v38 = vmul.f32 %v27, %v37
    %v39 = vmul.f32 %v30, %v37
    %v40 = vsub.f32 %v22, %v38
    %v41 = vsub.f32 %v23, %v39
    %v42 = vmul.f32 %v40, %v40
    %v43 = vmul.f32 %v41, %v41
    %v44 = vsel %vm24, %v42, 0.0
    %45 = vadd.xlane.f32.xlu0 %v44
    %v46 = vpop.xlane.xlu0 %45
    %v47 = vsel %vm24, %v43, 0.0
    %48 = vadd.xlane.f32.xlu0 %v47
    %v49 = vpop.xlane.xlu0 %48
    %v50 = vmul.f32 %v46, %v37
    %v51 = vmul.f32 %v49, %v37
    %v52 = vadd.f32 %v50, 1e-05
    %v53 = vadd.f32 %v51, 1e-05
    %v54 = vrsqrt.pop %v52
    %v55 = vmul.f32 %v54, %v52
    %v56 = vmul.f32 %v55, %v54
    %v57 = vmul.f32 0.5, %v56
    %v58 = vsub.f32 1.5, %v57
    %v59 = vmul.f32 %v54, %v58
    %vm60 = vweird.f32 %v52
    %vm61 = vweird.f32 %v54
    %vm62 = vmor %vm60, %vm61
    %v63 = vsel %vm62, %v54, %v59
    %v64 = vrsqrt.pop %v53
    %v65 = vmul.f32 %v64, %v53
    %v66 = vmul.f32 %v65, %v64
    %v67 = vmul.f32 0.5, %v66
    %v68 = vsub.f32 1.5, %v67
    %v69 = vmul.f32 %v64, %v68
    %vm70 = vweird.f32 %v53
    %vm71 = vweird.f32 %v64
    %vm72 = vmor %vm70, %vm71
    %v73 = vsel %vm72, %v64, %v69
    %v74 = vmul.f32 %v40, %v63
    %v75 = vmul.f32 %v41, %v73
    %v76 = vld [vmem:[%s1] sm:$0x1]
    %v78 = vperm.slane %v76, 0
    %v80 = vmul.f32 %v74, %v78
    %v81 = vmul.f32 %v75, %v78
    %v82 = vld [vmem:[%s2] sm:$0x1]
    %v84 = vperm.slane %v82, 0
    %v86 = vadd.f32 %v80, %v84
    %v87 = vadd.f32 %v81, %v84
    %v88 = vpack.c.bf16 %v87, %v86
    %v89 = vld [vmem:[%s3] sm:$0xf]
    %v90 = vld [vmem:[%s3 + $0x4] sm:$0xf]
    %v91 = vld [vmem:[%s3 + $0x8] sm:$0xf]
    %v92 = vld [vmem:[%s3 + $0xc] sm:$0xf]
    %v93 = vld [vmem:[%s3 + $0x10] sm:$0xf]
    %v94 = vld [vmem:[%s3 + $0x14] sm:$0xf]
    %v95 = vld [vmem:[%s3 + $0x18] sm:$0xf]
    %v96 = vld [vmem:[%s3 + $0x1c] sm:$0xf]
    %v97 = vld [vmem:[%s4] sm:$0x1]
    %v99 = vperm.slane %v97, 0
    %v109 = vunpack.c.l.b16 %v89
    %v110 = vunpack.c.l.b16 %v90
    %v111 = vunpack.c.l.b16 %v91
    %v112 = vunpack.c.l.b16 %v92
    %v113 = vunpack.c.l.b16 %v93
    %v114 = vunpack.c.l.b16 %v94
    %v115 = vunpack.c.l.b16 %v95
    %v116 = vunpack.c.l.b16 %v96
    %v117 = vpack.c.b16 %v110, %v109
    %v118 = vpack.c.b16 %v112, %v111
    %v119 = vpack.c.b16 %v114, %v113
    %v120 = vpack.c.b16 %v116, %v115
    %v122 = vsel %vm24, %v88, 0
    %v125 = vsel %vm24, %v117, 0
    %v128 = vsel %vm24, %v118, 0
    %v131 = vsel %vm24, %v119, 0
    %v134 = vsel %vm24, %v120, 0
    %136 = vmatpush.bf16.xpose.msra.mxu0 0
    %137 = vmatpush.bf16.xpose.msra.mxu0 0
    %138 = vmatpush.bf16.xpose.msra.mxu0 0
    %139 = vmatpush.bf16.xpose.msra.mxu0 0
    %140 = vmatpush.bf16.xpose.msra.mxu0 %v134
    %141 = vmatpush.bf16.xpose.msra.mxu0 %v131
    %142 = vmatpush.bf16.xpose.msra.mxu0 %v128
    %143 = vmatpush.bf16.xpose.msra.mxu0 %v125
    %144 = vmatmul.bf16.gmra.mxu0 %v122
    %v145 = vpop.f32.mrf.mxu0
    %v146 = vadd.f32 %v99, %v145
    %v147 = vpop.f32.mrf.mxu0
    %v148 = vadd.f32 %v99, %v147
    %149 = vdwg.mxu0
    %vm150 = vcmask 523264
    %151 = vst.msk [vmem:[#allocation2] sm:$0xff] %vm150, %v146
    %152 = vst.msk [vmem:[#allocation2 + $0x8] sm:$0xff] %vm150, %v148
    // Predicated region
    $region22: #{wrapper_forward.5} parent=1 // pred_check
      _
    $region23: #{wrapper_forward.5} parent=1 // pred_check_branch
      %154 = sbr.rel (0) target = $region25
    $region24: #{wrapper_forward.5} parent=1 // pred_region
      %156 = vsyncadd [#allocation3], 0
      %s157 = sshll.u32 [#allocation2], 4
      %s158 = int_to_ptr.vmem [resolvable:$true] %s157
      %s159 = sshll.u32 %s5, 4
      %s160 = int_to_ptr.hbm [resolvable:$true] %s159
      %165 = dma.vmem_to_hbm [thread:$0]  %s158, 256, %s160, [#allocation3], 128, 128, 8
    $region25: #{wrapper_forward.5} parent=1 // pred_fallthru
      _
    // Predicated region
    $region26: #{wrapper_forward.5} parent=1 // pred_check
      _
    $region27: #{wrapper_forward.5} parent=1 // pred_check_branch
      %167 = sbr.rel (0) target = $region29
    $region28: #{wrapper_forward.5} parent=1 // pred_region
      %169 = dma.done [#allocation3], 256
    $region29: #{wrapper_forward.5} parent=1 // pred_fallthru
      _
    %170 = vsyncpa [#allocation3], 1

// kernel: wrapper_forward.3
$region0: #{wrapper_forward.3}
  #allocation0 [shape = 'u32[]', space=smem, size = 0x4, offset = 0x4, fixed_abs, tag = 'smem constant byte address 0x4 - core index']
  #allocation1 [shape = 'u32[72,128]{1,0:T(1,128)}', space=vmem, size = 0x9000, scoped, tag = 'internal scratch']
  #allocation2 [shape = 'f32[8,32]{1,0:T(8,128)}', space=vmem, size = 0x1000, scoped, tag = 'scratch operand']
  %s0 = inlined_call_operand.vmem [shape: f32[16,32], index: 0, kind: input, shape index: {}]
  %s1 = inlined_call_operand.vmem [shape: f32[2,4,8,8], index: 1, kind: input, shape index: {}]
  %s2 = inlined_call_operand.vmem [shape: f32[2,4,8,8], index: 2, kind: input, shape index: {}]
  %s3 = inlined_call_operand.vmem [shape: f32[2,1,16], index: 3, kind: input, shape index: {}]
  %s4 = inlined_call_operand.vmem [shape: f32[1,32], index: 4, kind: input, shape index: {}]
  %s5 = inlined_call_operand.vmem [shape: f32[1,32], index: 5, kind: input, shape index: {}]
  %s6 = inlined_call_operand.vmem [shape: bf16[32,96], index: 6, kind: input, shape index: {}]
  %s7 = inlined_call_operand.vmem [shape: f32[1,96], index: 7, kind: input, shape index: {}]
  %s8 = inlined_call_operand.vmem [shape: bf16[32,32], index: 8, kind: input, shape index: {}]
  %s9 = inlined_call_operand.vmem [shape: f32[1,32], index: 9, kind: input, shape index: {}]
  %s10 = inlined_call_operand.vmem [shape: f32[1,32], index: 10, kind: input, shape index: {}]
  %s11 = inlined_call_operand.vmem [shape: f32[1,32], index: 11, kind: input, shape index: {}]
  %s12 = inlined_call_operand.vmem [shape: bf16[32,128], index: 12, kind: input, shape index: {}]
  %s13 = inlined_call_operand.vmem [shape: f32[1,128], index: 13, kind: input, shape index: {}]
  %s14 = inlined_call_operand.vmem [shape: bf16[128,32], index: 14, kind: input, shape index: {}]
  %s15 = inlined_call_operand.vmem [shape: f32[1,32], index: 15, kind: input, shape index: {}]
  %s16 = inlined_call_operand.vmem [shape: f32[16,32], index: 16, kind: output, shape index: {0}]
  %s17 = inlined_call_operand.vmem [shape: f32[2,4,16,8], index: 17, kind: output, shape index: {1}]
  %s18 = inlined_call_operand.vmem [shape: f32[2,4,16,8], index: 18, kind: output, shape index: {2}]
  %19 = xla_tuple %s16, %s17, %s18
  %s20 = sld [smem:[#allocation0]]
  $region113: #{wrapper_forward.3} parent=0
    _
  %s22 = ssub.s32 1, %s20
  %s23 = scalar_select 0, %s22, %s20
  loop: start=0, step=1, limit=4
  $region2: #{wrapper_forward.3} parent=0 // loop_pre_header
    _
  $region3: #{wrapper_forward.3} parent=0 // loop_header
    %s25 = sphi 0, %s29
    %p26 = scmp.ge.s32.totalorder %s25, 4
    %s35 = sphi 0, %s37
    %s38 = sphi 0, %s35
    %s39 = sphi 0, %s38
    %s55 = sphi 0, %s39
    %s61 = sphi 0, %s63
    %s64 = sphi 0, %s61
    %s65 = sphi 0, %s64
    %s81 = sphi 0, %s65
    %s87 = sphi 0, %s89
    %s90 = sphi 0, %s87
    %s91 = sphi 0, %s90
    %s107 = sphi 0, %s91
    %s113 = sphi 0, %s115
    %s116 = sphi 0, %s113
    %s117 = sphi 0, %s116
    %s133 = sphi 0, %s117
    %s137 = sphi 0, %s137
    %s139 = sphi 0, %s137
    %s140 = sphi 0, %s139
    %s154 = sphi 0, %s140
    %s158 = sphi 0, %s158
    %s160 = sphi 0, %s158
    %s161 = sphi 0, %s160
    %s175 = sphi 0, %s161
    %s179 = sphi 0, %s179
    %s181 = sphi 0, %s179
    %s182 = sphi 0, %s181
    %s196 = sphi 0, %s182
    %s200 = sphi 0, %s200
    %s202 = sphi 0, %s200
    %s203 = sphi 0, %s202
    %s217 = sphi 0, %s203
    %s221 = sphi 0, %s221
    %s223 = sphi 0, %s221
    %s224 = sphi 0, %s223
    %s238 = sphi 0, %s224
    %s242 = sphi 0, %s242
    %s244 = sphi 0, %s242
    %s245 = sphi 0, %s244
    %s259 = sphi 0, %s245
    %s263 = sphi 0, %s263
    %s265 = sphi 0, %s263
    %s266 = sphi 0, %s265
    %s280 = sphi 0, %s266
    %s284 = sphi 0, %s284
    %s286 = sphi 0, %s284
    %s287 = sphi 0, %s286
    %s301 = sphi 0, %s287
    %s305 = sphi 0, %s305
    %s307 = sphi 0, %s305
    %s308 = sphi 0, %s307
    %s322 = sphi 0, %s308
    %s326 = sphi 0, %s326
    %s328 = sphi 0, %s326
    %s329 = sphi 0, %s328
    %s343 = sphi 0, %s329
    %s347 = sphi 0, %s347
    %s349 = sphi 0, %s347
    %s350 = sphi 0, %s349
    %s364 = sphi 0, %s350
    %s368 = sphi 0, %s368
    %s370 = sphi 0, %s368
    %s371 = sphi 0, %s370
    %s385 = sphi 0, %s371
    %s391 = sphi 0, %s393
    %s394 = sphi 0, %s391
    %s395 = sphi 0, %s394
    %s411 = sphi 0, %s395
    %s417 = sphi 0, %s419
    %s420 = sphi 0, %s417
    %s421 = sphi 0, %s420
    %s437 = sphi 0, %s421
    %s443 = sphi 0, %s445
    %s446 = sphi 0, %s443
    %s447 = sphi 0, %s446
    %s463 = sphi 0, %s447
  $region4: #{wrapper_forward.3} parent=0 // loop_header_branch
    %28 = sbr.rel (%p26) target = $region8
  $region5: #{wrapper_forward.3} parent=0 // loop_body
    %s30 = ssub.s32 %s25, 1
    %s31 = ssub.s32 %s25, 2
    %s32 = sadd.s32 %s25, 1
    %s33 = ssub.s32 %s25, %s32
    %p34 = scmp.eq.s32.totalorder %s33, 0
    %s36 = sadd.s32 %s35, 1
    %s37 = scalar_select %p34, %s35, %s36
    %p40 = pneg %p34
    %p41 = scmp.eq.s32.totalorder %s25, 1
    %p42 = por %p40, %p41
    %p43 = scmp.ne.s32.totalorder %s35, %s38
    %p44 = scmp.eq.s32.totalorder %s25, 0
    %p45 = por %p43, %p44
    %p46 = scmp.ne.s32.totalorder %s35, %s38
    %p47 = scmp.eq.s32.totalorder %s30, 1
    %p48 = por %p46, %p47
    %p49 = scmp.ne.s32.totalorder %s38, %s39
    %p50 = scmp.eq.s32.totalorder %s30, 0
    %p51 = por %p49, %p50
    %p52 = scmp.ne.s32.totalorder %s38, %s39
    %p53 = scmp.eq.s32.totalorder %s31, 1
    %p54 = por %p52, %p53
    %p56 = scmp.ne.s32.totalorder %s39, %s55
    %p57 = scmp.eq.s32.totalorder %s31, 0
    %p58 = por %p56, %p57
    %s59 = ssub.s32 %s25, %s32
    %p60 = scmp.eq.s32.totalorder %s59, 0
    %s62 = sadd.s32 %s61, 1
    %s63 = scalar_select %p60, %s61, %s62
    %p66 = pneg %p60
    %p67 = scmp.eq.s32.totalorder %s25, 1
    %p68 = por %p66, %p67
    %p69 = scmp.ne.s32.totalorder %s61, %s64
    %p70 = scmp.eq.s32.totalorder %s25, 0
    %p71 = por %p69, %p70
    %p72 = scmp.ne.s32.totalorder %s61, %s64
    %p73 = scmp.eq.s32.totalorder %s30, 1
    %p74 = por %p72, %p73
    %p75 = scmp.ne.s32.totalorder %s64, %s65
    %p76 = scmp.eq.s32.totalorder %s30, 0
    %p77 = por %p75, %p76
    %p78 = scmp.ne.s32.totalorder %s64, %s65
    %p79 = scmp.eq.s32.totalorder %s31, 1
    %p80 = por %p78, %p79
    %p82 = scmp.ne.s32.totalorder %s65, %s81
    %p83 = scmp.eq.s32.totalorder %s31, 0
    %p84 = por %p82, %p83
    %s85 = ssub.s32 %s25, %s32
    %p86 = scmp.eq.s32.totalorder %s85, 0
    %s88 = sadd.s32 %s87, 1
    %s89 = scalar_select %p86, %s87, %s88
    %p92 = pneg %p86
    %p93 = scmp.eq.s32.totalorder %s25, 1
    %p94 = por %p92, %p93
    %p95 = scmp.ne.s32.totalorder %s87, %s90
    %p96 = scmp.eq.s32.totalorder %s25, 0
    %p97 = por %p95, %p96
    %p98 = scmp.ne.s32.totalorder %s87, %s90
    %p99 = scmp.eq.s32.totalorder %s30, 1
    %p100 = por %p98, %p99
    %p101 = scmp.ne.s32.totalorder %s90, %s91
    %p102 = scmp.eq.s32.totalorder %s30, 0
    %p103 = por %p101, %p102
    %p104 = scmp.ne.s32.totalorder %s90, %s91
    %p105 = scmp.eq.s32.totalorder %s31, 1
    %p106 = por %p104, %p105
    %p108 = scmp.ne.s32.totalorder %s91, %s107
    %p109 = scmp.eq.s32.totalorder %s31, 0
    %p110 = por %p108, %p109
    %s111 = ssub.s32 %s25, %s32
    %p112 = scmp.eq.s32.totalorder %s111, 0
    %s114 = sadd.s32 %s113, 1
    %s115 = scalar_select %p112, %s113, %s114
    %p118 = pneg %p112
    %p119 = scmp.eq.s32.totalorder %s25, 1
    %p120 = por %p118, %p119
    %p121 = scmp.ne.s32.totalorder %s113, %s116
    %p122 = scmp.eq.s32.totalorder %s25, 0
    %p123 = por %p121, %p122
    %p124 = scmp.ne.s32.totalorder %s113, %s116
    %p125 = scmp.eq.s32.totalorder %s30, 1
    %p126 = por %p124, %p125
    %p127 = scmp.ne.s32.totalorder %s116, %s117
    %p128 = scmp.eq.s32.totalorder %s30, 0
    %p129 = por %p127, %p128
    %p130 = scmp.ne.s32.totalorder %s116, %s117
    %p131 = scmp.eq.s32.totalorder %s31, 1
    %p132 = por %p130, %p131
    %p134 = scmp.ne.s32.totalorder %s117, %s133
    %p135 = scmp.eq.s32.totalorder %s31, 0
    %p136 = por %p134, %p135
    %s138 = sadd.s32 %s137, 1
    %p141 = scmp.eq.s32.totalorder %s25, 1
    %p142 = scmp.ne.s32.totalorder %s137, %s139
    %p143 = scmp.eq.s32.totalorder %s25, 0
    %p144 = por %p142, %p143
    %p145 = scmp.ne.s32.totalorder %s137, %s139
    %p146 = scmp.eq.s32.totalorder %s30, 1
    %p147 = por %p145, %p146
    %p148 = scmp.ne.s32.totalorder %s139, %s140
    %p149 = scmp.eq.s32.totalorder %s30, 0
    %p150 = por %p148, %p149
    %p151 = scmp.ne.s32.totalorder %s139, %s140
    %p152 = scmp.eq.s32.totalorder %s31, 1
    %p153 = por %p151, %p152
    %p155 = scmp.ne.s32.totalorder %s140, %s154
    %p156 = scmp.eq.s32.totalorder %s31, 0
    %p157 = por %p155, %p156
    %s159 = sadd.s32 %s158, 1
    %p162 = scmp.eq.s32.totalorder %s25, 1
    %p163 = scmp.ne.s32.totalorder %s158, %s160
    %p164 = scmp.eq.s32.totalorder %s25, 0
    %p165 = por %p163, %p164
    %p166 = scmp.ne.s32.totalorder %s158, %s160
    %p167 = scmp.eq.s32.totalorder %s30, 1
    %p168 = por %p166, %p167
    %p169 = scmp.ne.s32.totalorder %s160, %s161
    %p170 = scmp.eq.s32.totalorder %s30, 0
    %p171 = por %p169, %p170
    %p172 = scmp.ne.s32.totalorder %s160, %s161
    %p173 = scmp.eq.s32.totalorder %s31, 1
    %p174 = por %p172, %p173
    %p176 = scmp.ne.s32.totalorder %s161, %s175
    %p177 = scmp.eq.s32.totalorder %s31, 0
    %p178 = por %p176, %p177
    %s180 = sadd.s32 %s179, 1
    %p183 = scmp.eq.s32.totalorder %s25, 1
    %p184 = scmp.ne.s32.totalorder %s179, %s181
    %p185 = scmp.eq.s32.totalorder %s25, 0
    %p186 = por %p184, %p185
    %p187 = scmp.ne.s32.totalorder %s179, %s181
    %p188 = scmp.eq.s32.totalorder %s30, 1
    %p189 = por %p187, %p188
    %p190 = scmp.ne.s32.totalorder %s181, %s182
    %p191 = scmp.eq.s32.totalorder %s30, 0
    %p192 = por %p190, %p191
    %p193 = scmp.ne.s32.totalorder %s181, %s182
    %p194 = scmp.eq.s32.totalorder %s31, 1
    %p195 = por %p193, %p194
    %p197 = scmp.ne.s32.totalorder %s182, %s196
    %p198 = scmp.eq.s32.totalorder %s31, 0
    %p199 = por %p197, %p198
    %s201 = sadd.s32 %s200, 1
    %p204 = scmp.eq.s32.totalorder %s25, 1
    %p205 = scmp.ne.s32.totalorder %s200, %s202
    %p206 = scmp.eq.s32.totalorder %s25, 0
    %p207 = por %p205, %p206
    %p208 = scmp.ne.s32.totalorder %s200, %s202
    %p209 = scmp.eq.s32.totalorder %s30, 1
    %p210 = por %p208, %p209
    %p211 = scmp.ne.s32.totalorder %s202, %s203
    %p212 = scmp.eq.s32.totalorder %s30, 0
    %p213 = por %p211, %p212
    %p214 = scmp.ne.s32.totalorder %s202, %s203
    %p215 = scmp.eq.s32.totalorder %s31, 1
    %p216 = por %p214, %p215
    %p218 = scmp.ne.s32.totalorder %s203, %s217
    %p219 = scmp.eq.s32.totalorder %s31, 0
    %p220 = por %p218, %p219
    %s222 = sadd.s32 %s221, 1
    %p225 = scmp.eq.s32.totalorder %s25, 1
    %p226 = scmp.ne.s32.totalorder %s221, %s223
    %p227 = scmp.eq.s32.totalorder %s25, 0
    %p228 = por %p226, %p227
    %p229 = scmp.ne.s32.totalorder %s221, %s223
    %p230 = scmp.eq.s32.totalorder %s30, 1
    %p231 = por %p229, %p230
    %p232 = scmp.ne.s32.totalorder %s223, %s224
    %p233 = scmp.eq.s32.totalorder %s30, 0
    %p234 = por %p232, %p233
    %p235 = scmp.ne.s32.totalorder %s223, %s224
    %p236 = scmp.eq.s32.totalorder %s31, 1
    %p237 = por %p235, %p236
    %p239 = scmp.ne.s32.totalorder %s224, %s238
    %p240 = scmp.eq.s32.totalorder %s31, 0
    %p241 = por %p239, %p240
    %s243 = sadd.s32 %s242, 1
    %p246 = scmp.eq.s32.totalorder %s25, 1
    %p247 = scmp.ne.s32.totalorder %s242, %s244
    %p248 = scmp.eq.s32.totalorder %s25, 0
    %p249 = por %p247, %p248
    %p250 = scmp.ne.s32.totalorder %s242, %s244
    %p251 = scmp.eq.s32.totalorder %s30, 1
    %p252 = por %p250, %p251
    %p253 = scmp.ne.s32.totalorder %s244, %s245
    %p254 = scmp.eq.s32.totalorder %s30, 0
    %p255 = por %p253, %p254
    %p256 = scmp.ne.s32.totalorder %s244, %s245
    %p257 = scmp.eq.s32.totalorder %s31, 1
    %p258 = por %p256, %p257
    %p260 = scmp.ne.s32.totalorder %s245, %s259
    %p261 = scmp.eq.s32.totalorder %s31, 0
    %p262 = por %p260, %p261
    %s264 = sadd.s32 %s263, 1
    %p267 = scmp.eq.s32.totalorder %s25, 1
    %p268 = scmp.ne.s32.totalorder %s263, %s265
    %p269 = scmp.eq.s32.totalorder %s25, 0
    %p270 = por %p268, %p269
    %p271 = scmp.ne.s32.totalorder %s263, %s265
    %p272 = scmp.eq.s32.totalorder %s30, 1
    %p273 = por %p271, %p272
    %p274 = scmp.ne.s32.totalorder %s265, %s266
    %p275 = scmp.eq.s32.totalorder %s30, 0
    %p276 = por %p274, %p275
    %p277 = scmp.ne.s32.totalorder %s265, %s266
    %p278 = scmp.eq.s32.totalorder %s31, 1
    %p279 = por %p277, %p278
    %p281 = scmp.ne.s32.totalorder %s266, %s280
    %p282 = scmp.eq.s32.totalorder %s31, 0
    %p283 = por %p281, %p282
    %s285 = sadd.s32 %s284, 1
    %p288 = scmp.eq.s32.totalorder %s25, 1
    %p289 = scmp.ne.s32.totalorder %s284, %s286
    %p290 = scmp.eq.s32.totalorder %s25, 0
    %p291 = por %p289, %p290
    %p292 = scmp.ne.s32.totalorder %s284, %s286
    %p293 = scmp.eq.s32.totalorder %s30, 1
    %p294 = por %p292, %p293
    %p295 = scmp.ne.s32.totalorder %s286, %s287
    %p296 = scmp.eq.s32.totalorder %s30, 0
    %p297 = por %p295, %p296
    %p298 = scmp.ne.s32.totalorder %s286, %s287
    %p299 = scmp.eq.s32.totalorder %s31, 1
    %p300 = por %p298, %p299
    %p302 = scmp.ne.s32.totalorder %s287, %s301
    %p303 = scmp.eq.s32.totalorder %s31, 0
    %p304 = por %p302, %p303
    %s306 = sadd.s32 %s305, 1
    %p309 = scmp.eq.s32.totalorder %s25, 1
    %p310 = scmp.ne.s32.totalorder %s305, %s307
    %p311 = scmp.eq.s32.totalorder %s25, 0
    %p312 = por %p310, %p311
    %p313 = scmp.ne.s32.totalorder %s305, %s307
    %p314 = scmp.eq.s32.totalorder %s30, 1
    %p315 = por %p313, %p314
    %p316 = scmp.ne.s32.totalorder %s307, %s308
    %p317 = scmp.eq.s32.totalorder %s30, 0
    %p318 = por %p316, %p317
    %p319 = scmp.ne.s32.totalorder %s307, %s308
    %p320 = scmp.eq.s32.totalorder %s31, 1
    %p321 = por %p319, %p320
    %p323 = scmp.ne.s32.totalorder %s308, %s322
    %p324 = scmp.eq.s32.totalorder %s31, 0
    %p325 = por %p323, %p324
    %s327 = sadd.s32 %s326, 1
    %p330 = scmp.eq.s32.totalorder %s25, 1
    %p331 = scmp.ne.s32.totalorder %s326, %s328
    %p332 = scmp.eq.s32.totalorder %s25, 0
    %p333 = por %p331, %p332
    %p334 = scmp.ne.s32.totalorder %s326, %s328
    %p335 = scmp.eq.s32.totalorder %s30, 1
    %p336 = por %p334, %p335
    %p337 = scmp.ne.s32.totalorder %s328, %s329
    %p338 = scmp.eq.s32.totalorder %s30, 0
    %p339 = por %p337, %p338
    %p340 = scmp.ne.s32.totalorder %s328, %s329
    %p341 = scmp.eq.s32.totalorder %s31, 1
    %p342 = por %p340, %p341
    %p344 = scmp.ne.s32.totalorder %s329, %s343
    %p345 = scmp.eq.s32.totalorder %s31, 0
    %p346 = por %p344, %p345
    %s348 = sadd.s32 %s347, 1
    %p351 = scmp.eq.s32.totalorder %s25, 1
    %p352 = scmp.ne.s32.totalorder %s347, %s349
    %p353 = scmp.eq.s32.totalorder %s25, 0
    %p354 = por %p352, %p353
    %p355 = scmp.ne.s32.totalorder %s347, %s349
    %p356 = scmp.eq.s32.totalorder %s30, 1
    %p357 = por %p355, %p356
    %p358 = scmp.ne.s32.totalorder %s349, %s350
    %p359 = scmp.eq.s32.totalorder %s30, 0
    %p360 = por %p358, %p359
    %p361 = scmp.ne.s32.totalorder %s349, %s350
    %p362 = scmp.eq.s32.totalorder %s31, 1
    %p363 = por %p361, %p362
    %p365 = scmp.ne.s32.totalorder %s350, %s364
    %p366 = scmp.eq.s32.totalorder %s31, 0
    %p367 = por %p365, %p366
    %s369 = sadd.s32 %s368, 1
    %p372 = scmp.eq.s32.totalorder %s25, 1
    %p373 = scmp.ne.s32.totalorder %s368, %s370
    %p374 = scmp.eq.s32.totalorder %s25, 0
    %p375 = por %p373, %p374
    %p376 = scmp.ne.s32.totalorder %s368, %s370
    %p377 = scmp.eq.s32.totalorder %s30, 1
    %p378 = por %p376, %p377
    %p379 = scmp.ne.s32.totalorder %s370, %s371
    %p380 = scmp.eq.s32.totalorder %s30, 0
    %p381 = por %p379, %p380
    %p382 = scmp.ne.s32.totalorder %s370, %s371
    %p383 = scmp.eq.s32.totalorder %s31, 1
    %p384 = por %p382, %p383
    %p386 = scmp.ne.s32.totalorder %s371, %s385
    %p387 = scmp.eq.s32.totalorder %s31, 0
    %p388 = por %p386, %p387
    %s389 = ssub.s32 %s25, %s32
    %p390 = scmp.eq.s32.totalorder %s389, 0
    %s392 = sadd.s32 %s391, 1
    %s393 = scalar_select %p390, %s391, %s392
    %p396 = pneg %p390
    %p397 = scmp.eq.s32.totalorder %s25, 1
    %p398 = por %p396, %p397
    %p399 = scmp.ne.s32.totalorder %s391, %s394
    %p400 = scmp.eq.s32.totalorder %s25, 0
    %p401 = por %p399, %p400
    %p402 = scmp.ne.s32.totalorder %s391, %s394
    %p403 = scmp.eq.s32.totalorder %s30, 1
    %p404 = por %p402, %p403
    %p405 = scmp.ne.s32.totalorder %s394, %s395
    %p406 = scmp.eq.s32.totalorder %s30, 0
    %p407 = por %p405, %p406
    %p408 = scmp.ne.s32.totalorder %s394, %s395
    %p409 = scmp.eq.s32.totalorder %s31, 1
    %p410 = por %p408, %p409
    %p412 = scmp.ne.s32.totalorder %s395, %s411
    %p413 = scmp.eq.s32.totalorder %s31, 0
    %p414 = por %p412, %p413
    %s415 = ssub.s32 %s25, %s32
    %p416 = scmp.eq.s32.totalorder %s415, 0
    %s418 = sadd.s32 %s417, 1
    %s419 = scalar_select %p416, %s417, %s418
    %p422 = pneg %p416
    %p423 = scmp.eq.s32.totalorder %s25, 1
    %p424 = por %p422, %p423
    %p425 = scmp.ne.s32.totalorder %s417, %s420
    %p426 = scmp.eq.s32.totalorder %s25, 0
    %p427 = por %p425, %p426
    %p428 = scmp.ne.s32.totalorder %s417, %s420
    %p429 = scmp.eq.s32.totalorder %s30, 1
    %p430 = por %p428, %p429
    %p431 = scmp.ne.s32.totalorder %s420, %s421
    %p432 = scmp.eq.s32.totalorder %s30, 0
    %p433 = por %p431, %p432
    %p434 = scmp.ne.s32.totalorder %s420, %s421
    %p435 = scmp.eq.s32.totalorder %s31, 1
    %p436 = por %p434, %p435
    %p438 = scmp.ne.s32.totalorder %s421, %s437
    %p439 = scmp.eq.s32.totalorder %s31, 0
    %p440 = por %p438, %p439
    %s441 = ssub.s32 %s25, %s32
    %p442 = scmp.eq.s32.totalorder %s441, 0
    %s444 = sadd.s32 %s443, 1
    %s445 = scalar_select %p442, %s443, %s444
    %p448 = pneg %p442
    %p449 = scmp.eq.s32.totalorder %s25, 1
    %p450 = por %p448, %p449
    %p451 = scmp.ne.s32.totalorder %s443, %s446
    %p452 = scmp.eq.s32.totalorder %s25, 0
    %p453 = por %p451, %p452
    %p454 = scmp.ne.s32.totalorder %s443, %s446
    %p455 = scmp.eq.s32.totalorder %s30, 1
    %p456 = por %p454, %p455
    %p457 = scmp.ne.s32.totalorder %s446, %s447
    %p458 = scmp.eq.s32.totalorder %s30, 0
    %p459 = por %p457, %p458
    %p460 = scmp.ne.s32.totalorder %s446, %s447
    %p461 = scmp.eq.s32.totalorder %s31, 1
    %p462 = por %p460, %p461
    %p464 = scmp.ne.s32.totalorder %s447, %s463
    %p465 = scmp.eq.s32.totalorder %s31, 0
    %p466 = por %p464, %p465
    %p467 = scmp.le.s32.totalorder 1, %s25
    %p468 = scmp.lt.s32.totalorder %s25, 3
    %p469 = pnand %p467, %p468
    %p470 = pneg %p469
    // Predicated region
    $region9: #{wrapper_forward.3} parent=5 // pred_check
      _
    $region10: #{wrapper_forward.3} parent=5 // pred_check_branch
      %472 = sbr.rel (%p469) target = $region12
    $region11: #{wrapper_forward.3} parent=5 // pred_region
      %s473 = ssub.s32 %s25, 1
      // Predicated region
      $region13: #{wrapper_forward.3} parent=11 // pred_check
        %p474 = pneg %p150
      $region14: #{wrapper_forward.3} parent=11 // pred_check_branch
        %476 = sbr.rel (%p474) target = $region16
      $region15: #{wrapper_forward.3} parent=11 // pred_region
        _
      $region16: #{wrapper_forward.3} parent=11 // pred_fallthru
        _
      // Predicated region
      $region17: #{wrapper_forward.3} parent=11 // pred_check
        %p477 = pneg %p171
      $region18: #{wrapper_forward.3} parent=11 // pred_check_branch
        %479 = sbr.rel (%p477) target = $region20
      $region19: #{wrapper_forward.3} parent=11 // pred_region
        _
      $region20: #{wrapper_forward.3} parent=11 // pred_fallthru
        _
      // Predicated region
      $region21: #{wrapper_forward.3} parent=11 // pred_check
        %p480 = pneg %p192
      $region22: #{wrapper_forward.3} parent=11 // pred_check_branch
        %482 = sbr.rel (%p480) target = $region24
      $region23: #{wrapper_forward.3} parent=11 // pred_region
        _
      $region24: #{wrapper_forward.3} parent=11 // pred_fallthru
        _
      // Predicated region
      $region25: #{wrapper_forward.3} parent=11 // pred_check
        %p483 = pneg %p213
      $region26: #{wrapper_forward.3} parent=11 // pred_check_branch
        %485 = sbr.rel (%p483) target = $region28
      $region27: #{wrapper_forward.3} parent=11 // pred_region
        _
      $region28: #{wrapper_forward.3} parent=11 // pred_fallthru
        _
      // Predicated region
      $region29: #{wrapper_forward.3} parent=11 // pred_check
        %p486 = pneg %p234
      $region30: #{wrapper_forward.3} parent=11 // pred_check_branch
        %488 = sbr.rel (%p486) target = $region32
      $region31: #{wrapper_forward.3} parent=11 // pred_region
        _
      $region32: #{wrapper_forward.3} parent=11 // pred_fallthru
        _
      // Predicated region
      $region33: #{wrapper_forward.3} parent=11 // pred_check
        %p489 = pneg %p255
      $region34: #{wrapper_forward.3} parent=11 // pred_check_branch
        %491 = sbr.rel (%p489) target = $region36
      $region35: #{wrapper_forward.3} parent=11 // pred_region
        _
      $region36: #{wrapper_forward.3} parent=11 // pred_fallthru
        _
      // Predicated region
      $region37: #{wrapper_forward.3} parent=11 // pred_check
        %p492 = pneg %p276
      $region38: #{wrapper_forward.3} parent=11 // pred_check_branch
        %494 = sbr.rel (%p492) target = $region40
      $region39: #{wrapper_forward.3} parent=11 // pred_region
        _
      $region40: #{wrapper_forward.3} parent=11 // pred_fallthru
        _
      // Predicated region
      $region41: #{wrapper_forward.3} parent=11 // pred_check
        %p495 = pneg %p297
      $region42: #{wrapper_forward.3} parent=11 // pred_check_branch
        %497 = sbr.rel (%p495) target = $region44
      $region43: #{wrapper_forward.3} parent=11 // pred_region
        _
      $region44: #{wrapper_forward.3} parent=11 // pred_fallthru
        _
      // Predicated region
      $region45: #{wrapper_forward.3} parent=11 // pred_check
        %p498 = pneg %p318
      $region46: #{wrapper_forward.3} parent=11 // pred_check_branch
        %500 = sbr.rel (%p498) target = $region48
      $region47: #{wrapper_forward.3} parent=11 // pred_region
        _
      $region48: #{wrapper_forward.3} parent=11 // pred_fallthru
        _
      // Predicated region
      $region49: #{wrapper_forward.3} parent=11 // pred_check
        %p501 = pneg %p339
      $region50: #{wrapper_forward.3} parent=11 // pred_check_branch
        %503 = sbr.rel (%p501) target = $region52
      $region51: #{wrapper_forward.3} parent=11 // pred_region
        _
      $region52: #{wrapper_forward.3} parent=11 // pred_fallthru
        _
      // Predicated region
      $region53: #{wrapper_forward.3} parent=11 // pred_check
        %p504 = pneg %p360
      $region54: #{wrapper_forward.3} parent=11 // pred_check_branch
        %506 = sbr.rel (%p504) target = $region56
      $region55: #{wrapper_forward.3} parent=11 // pred_region
        _
      $region56: #{wrapper_forward.3} parent=11 // pred_fallthru
        _
      // Predicated region
      $region57: #{wrapper_forward.3} parent=11 // pred_check
        %p507 = pneg %p381
      $region58: #{wrapper_forward.3} parent=11 // pred_check_branch
        %509 = sbr.rel (%p507) target = $region60
      $region59: #{wrapper_forward.3} parent=11 // pred_region
        _
      $region60: #{wrapper_forward.3} parent=11 // pred_fallthru
        _
    $region12: #{wrapper_forward.3} parent=5 // pred_fallthru
      _
    %p510 = scmp.lt.s32.totalorder %s25, 2
    // Predicated region
    $region61: #{wrapper_forward.3} parent=5 // pred_check
      %p511 = pneg %p510
    $region62: #{wrapper_forward.3} parent=5 // pred_check_branch
      %513 = sbr.rel (%p511) target = $region64
    $region63: #{wrapper_forward.3} parent=5 // pred_region
      // Predicated region
      $region65: #{wrapper_forward.3} parent=63 // pred_check
        %p514 = pneg %p45
      $region66: #{wrapper_forward.3} parent=63 // pred_check_branch
        %516 = sbr.rel (%p514) target = $region68
      $region67: #{wrapper_forward.3} parent=63 // pred_region
        %p517 = scmp.lt.s32.totalorder %s25, 1
        %s518 = scalar_select %p517, %s25, 1
        %s519 = smul.addr %s518, 8
        %s520 = scalar_lea.vmem %s0, %s519
      $region68: #{wrapper_forward.3} parent=63 // pred_fallthru
        _
      // Predicated region
      $region69: #{wrapper_forward.3} parent=63 // pred_check
        %p521 = pneg %p71
      $region70: #{wrapper_forward.3} parent=63 // pred_check_branch
        %523 = sbr.rel (%p521) target = $region72
      $region71: #{wrapper_forward.3} parent=63 // pred_region
        %p524 = scmp.lt.s32.totalorder %s25, 1
        %s525 = scalar_select %p524, %s25, 1
        %s526 = smul.addr %s525, 4
        %s527 = smul.addr %s526, 8
        %s528 = scalar_lea.vmem %s1, %s527
      $region72: #{wrapper_forward.3} parent=63 // pred_fallthru
        _
      // Predicated region
      $region73: #{wrapper_forward.3} parent=63 // pred_check
        %p529 = pneg %p97
      $region74: #{wrapper_forward.3} parent=63 // pred_check_branch
        %531 = sbr.rel (%p529) target = $region76
      $region75: #{wrapper_forward.3} parent=63 // pred_region
        %p532 = scmp.lt.s32.totalorder %s25, 1
        %s533 = scalar_select %p532, %s25, 1
        %s534 = smul.addr %s533, 4
        %s535 = smul.addr %s534, 8
        %s536 = scalar_lea.vmem %s2, %s535
      $region76: #{wrapper_forward.3} parent=63 // pred_fallthru
        _
      // Predicated region
      $region77: #{wrapper_forward.3} parent=63 // pred_check
        %p537 = pneg %p123
      $region78: #{wrapper_forward.3} parent=63 // pred_check_branch
        %539 = sbr.rel (%p537) target = $region80
      $region79: #{wrapper_forward.3} parent=63 // pred_region
        %p540 = scmp.lt.s32.totalorder %s25, 1
        %s541 = scalar_select %p540, %s25, 1
        %s542 = scalar_lea.vmem %s3, %s541
      $region80: #{wrapper_forward.3} parent=63 // pred_fallthru
        _
    $region64: #{wrapper_forward.3} parent=5 // pred_fallthru
      _
    %p543 = scmp.le.s32.totalorder 1, %s25
    %p544 = scmp.lt.s32.totalorder %s25, 3
    %p545 = pnand %p543, %p544
    %p546 = pneg %p545
    // Predicated region
    $region81: #{wrapper_forward.3} parent=5 // pred_check
      _
    $region82: #{wrapper_forward.3} parent=5 // pred_check_branch
      %548 = sbr.rel (%p545) target = $region84
    $region83: #{wrapper_forward.3} parent=5 // pred_region
      %s549 = ssub.s32 %s25, 1
      %p550 = scmp.lt.s32.totalorder %s30, 1
      %s551 = scalar_select %p550, %s30, 1
      %s552 = smul.addr %s551, 8
      %s553 = scalar_lea.vmem %s0, %s552
      %p554 = pneg %p51
      %p555 = pneg %p48
      %p556 = scmp.lt.s32.totalorder %s30, 1
      %s557 = scalar_select %p556, %s30, 1
      %s558 = smul.addr %s557, 4
      %s559 = smul.addr %s558, 8
      %s560 = scalar_lea.vmem %s1, %s559
      %p561 = pneg %p77
      %p562 = pneg %p74
      %p563 = scmp.lt.s32.totalorder %s30, 1
      %s564 = scalar_select %p563, %s30, 1
      %s565 = smul.addr %s564, 4
      %s566 = smul.addr %s565, 8
      %s567 = scalar_lea.vmem %s2, %s566
      %p568 = pneg %p103
      %p569 = pneg %p100
      %p570 = scmp.lt.s32.totalorder %s30, 1
      %s571 = scalar_select %p570, %s30, 1
      %s572 = scalar_lea.vmem %s3, %s571
      %p573 = pneg %p129
      %p574 = pneg %p126
      %p575 = pneg %p150
      %p576 = pneg %p147
      %p577 = pneg %p171
      %p578 = pneg %p168
      %p579 = pneg %p192
      %p580 = pneg %p189
      %p581 = pneg %p213
      %p582 = pneg %p210
      %p583 = pneg %p234
      %p584 = pneg %p231
      %p585 = pneg %p255
      %p586 = pneg %p252
      %p587 = pneg %p276
      %p588 = pneg %p273
      %p589 = pneg %p297
      %p590 = pneg %p294
      %p591 = pneg %p318
      %p592 = pneg %p315
      %p593 = pneg %p339
      %p594 = pneg %p336
      %p595 = pneg %p360
      %p596 = pneg %p357
      %p597 = pneg %p381
      %p598 = pneg %p378
      %p599 = pneg %p407
      %p600 = pneg %p404
      %p601 = scmp.lt.s32.totalorder %s30, 1
      %s602 = scalar_select %p601, %s30, 1
      %s603 = smul.addr %s602, 8
      %s604 = scalar_lea.vmem %s16, %s603
      %p605 = pneg %p433
      %p606 = pneg %p430
      %p607 = scmp.lt.s32.totalorder %s30, 1
      %s608 = scalar_select %p607, %s30, 1
      %s609 = smul.addr %s608, 8
      %s610 = smul.addr %s609, 8
      %s611 = scalar_lea.vmem %s17, %s610
      %p612 = pneg %p459
      %p613 = pneg %p456
      %p614 = scmp.lt.s32.totalorder %s30, 1
      %s615 = scalar_select %p614, %s30, 1
      %s616 = smul.addr %s615, 8
      %s617 = smul.addr %s616, 8
      %s618 = scalar_lea.vmem %s18, %s617
      %p619 = scmp.lt.s32.totalorder %s30, 1
      %s620 = scalar_select %p619, %s30, 1
      %s621 = smul.addr %s620, 8
      %s622 = scalar_lea.vmem %s0, %s621
      %p623 = scmp.lt.s32.totalorder %s30, 1
      %s624 = scalar_select %p623, %s30, 1
      %s625 = smul.addr %s624, 4
      %s626 = smul.addr %s625, 8
      %s627 = scalar_lea.vmem %s1, %s626
      %p628 = scmp.lt.s32.totalorder %s30, 1
      %s629 = scalar_select %p628, %s30, 1
      %s630 = smul.addr %s629, 4
      %s631 = smul.addr %s630, 8
      %s632 = scalar_lea.vmem %s2, %s631
      %p633 = scmp.lt.s32.totalorder %s30, 1
      %s634 = scalar_select %p633, %s30, 1
      %s635 = scalar_lea.vmem %s3, %s634
      %p636 = scmp.lt.s32.totalorder %s30, 1
      %s637 = scalar_select %p636, %s30, 1
      %s638 = smul.addr %s637, 8
      %s639 = scalar_lea.vmem %s16, %s638
      %p640 = scmp.lt.s32.totalorder %s30, 1
      %s641 = scalar_select %p640, %s30, 1
      %s642 = smul.addr %s641, 8
      %s643 = smul.addr %s642, 8
      %s644 = scalar_lea.vmem %s17, %s643
      %p645 = scmp.lt.s32.totalorder %s30, 1
      %s646 = scalar_select %p645, %s30, 1
      %s647 = smul.addr %s646, 8
      %s648 = smul.addr %s647, 8
      %s649 = scalar_lea.vmem %s18, %s648
      %v651 = vld [vmem:[%s622] sm:$0xff]
      %vm652 = vcmask 261120
      %v653 = vsel %vm652, %v651, 0.0
      %654 = vadd.xlane.f32.xlu0 %v653
      %v655 = vpop.xlane.xlu0 %654
      %v656 = vrcp.pop 32.0
      %v657 = vmul.f32 32.0, %v656
      %v658 = vsub.f32 1.0, %v657
      %v659 = vmul.f32 %v656, %v658
      %v660 = vadd.f32 %v656, %v659
      %vm661 = vweird.f32 %v656
      %v662 = vsel %vm661, %v656, %v660
      %v663 = vmul.f32 %v655, %v662
      %v664 = vsub.f32 %v651, %v663
      %v665 = vmul.f32 %v664, %v664
      %v666 = vsel %vm652, %v665, 0.0
      %667 = vadd.xlane.f32.xlu0 %v666
      %v668 = vpop.xlane.xlu0 %667
      %v669 = vmul.f32 %v668, %v662
      %v670 = vadd.f32 %v669, 1e-05
      %v671 = vrsqrt.pop %v670
      %v672 = vmul.f32 %v671, %v670
      %v673 = vmul.f32 %v672, %v671
      %v674 = vmul.f32 0.5, %v673
      %v675 = vsub.f32 1.5, %v674
      %v676 = vmul.f32 %v671, %v675
      %vm677 = vweird.f32 %v670
      %vm678 = vweird.f32 %v671
      %vm679 = vmor %vm677, %vm678
      %v680 = vsel %vm679, %v671, %v676
      %v681 = vmul.f32 %v664, %v680
      %v682 = vld [vmem:[%s4] sm:$0x1]
      %v684 = vperm.slane %v682, 0
      %v686 = vmul.f32 %v681, %v684
      %v687 = vld [vmem:[%s5] sm:$0x1]
      %v689 = vperm.slane %v687, 0
      %v691 = vadd.f32 %v686, %v689
      %v692 = vpack.c.bf16 %v691, %v691
      %v693 = vld [vmem:[%s6] sm:$0xf]
      %v694 = vld [vmem:[%s6 + $0x4] sm:$0xf]
      %v695 = vld [vmem:[%s6 + $0x8] sm:$0xf]
      %v696 = vld [vmem:[%s6 + $0xc] sm:$0xf]
      %v697 = vld [vmem:[%s7] sm:$0x1]
      %v699 = vperm.slane %v697, 0
      %v705 = vunpack.c.l.b16 %v693
      %v706 = vunpack.c.l.b16 %v694
      %v707 = vunpack.c.l.b16 %v695
      %v708 = vunpack.c.l.b16 %v696
      %v709 = vpack.c.b16 %v706, %v705
      %v710 = vpack.c.b16 %v708, %v707
      %v714 = vsel %vm652, %v692, 0
      %716 = vmatpush.bf16.msra.mxu0 0
      %717 = vmatpush.bf16.msra.mxu0 0
      %718 = vmatpush.bf16.msra.mxu0 0
      %719 = vmatpush.bf16.msra.mxu0 0
      %720 = vmatpush.bf16.msra.mxu0 0
      %721 = vmatpush.bf16.msra.mxu0 0
      %722 = vmatpush.bf16.msra.mxu0 %v710
      %723 = vmatpush.bf16.msra.mxu0 %v709
      %724 = vmatmul.bf16.gmra.mxu0 %v714
      %v725 = vpop.f32.mrf.mxu0
      %v726 = vadd.f32 %v699, %v725
      %v727 = vpop.f32.mrf.mxu0
      %728 = vdwg.mxu0
      %v729 = vld [vmem:[%s635] sm:$0x1]
      %v730 = vsub.f32 1.0, %v729
      %v731 = vmul.f32 %v730, -1e+09
      %v732 = vlaneseq
      %v733 = vshrl.u32 %v732, 7
      %v734 = vadd.s32 %v733, 8
      %v735 = vlaneseq
      %v736 = vand.u32 %v735, 127
      %vm737 = vcmp.le.s32.totalorder %v736, %v734
      %v738 = vsel %vm737, 0.0, -1e+09
      %v740 = vperm.slane %v731, 0
      %v742 = vadd.f32 %v740, %v738
      %v743 = vmul.f32 %v726, 0.35355338
      %v744 = vld [vmem:[%s627] sm:$0xff]
      %vm745 = vcmask 64512
      %746 = vst.msk [vmem:[%s644] sm:$0xff] %vm745, %v744
      %v747 = vld [vmem:[%s632] sm:$0xff]
      %748 = vst.msk [vmem:[%s649] sm:$0xff] %vm745, %v747
      %750 = vrot.lane.b32.xlu0 %v726, 96
      %v751 = vpop.permute.xlu0 %750
      %753 = vst.msk [vmem:[%s644 + $0x8] sm:$0xff] %vm745, %v751
      %754 = vrot.lane.b32.xlu0 %v726, 64
      %v755 = vpop.permute.xlu0 %754
      %757 = vst.msk [vmem:[%s649 + $0x8] sm:$0xff] %vm745, %v755
      %v758 = vld [vmem:[%s644] sm:$0xff]
      %v759 = vld [vmem:[%s644 + $0x8] sm:$0xff]
      %v760 = vld [vmem:[%s649] sm:$0xff]
      %v761 = vld [vmem:[%s649 + $0x8] sm:$0xff]
      %v762 = vpack.c.bf16 %v743, %v743
      %v763 = vpack.c.bf16 %v759, %v758
      %v765 = vsel %vm745, %v762, 0
      %v768 = vsel %vm745, %v763, 0
      %770 = vmatpush.bf16.xpose.msra.mxu0 0
      %771 = vmatpush.bf16.xpose.msra.mxu0 0
      %772 = vmatpush.bf16.xpose.msra.mxu0 0
      %773 = vmatpush.bf16.xpose.msra.mxu0 0
      %774 = vmatpush.bf16.xpose.msra.mxu0 0
      %775 = vmatpush.bf16.xpose.msra.mxu0 0
      %776 = vmatpush.bf16.xpose.msra.mxu0 0
      %777 = vmatpush.bf16.xpose.msra.mxu0 %v768
      %778 = vmatmul.bf16.gmra.mxu0 %v765
      %v779 = vpop.f32.mrf.mxu0
      %v780 = vadd.f32 %v742, %v779
      %v781 = vpop.f32.mrf.mxu0
      %782 = vdwg.mxu0
      %vm783 = vcmask 130048
      %v784 = vsel %vm783, %v780, -inf
      %785 = vmax.xlane.f32.xlu0 %v784
      %v786 = vpop.xlane.xlu0 %785
      %v787 = vsub.f32 %v780, %v786
      %v788 = vmul.f32 %v787, 1.442695
      %v789 = vpow.pop %v788
      %v790 = vsel %vm783, %v789, 0.0
      %791 = vadd.xlane.f32.xlu0 %v790
      %v792 = vpop.xlane.xlu0 %791
      %v793 = vrcp.pop %v792
      %v794 = vmul.f32 %v789, %v793
      %v795 = vpack.c.bf16 %v794, %v794
      %v796 = vpack.c.bf16 %v761, %v760
      %v798 = vsel %vm783, %v795, 0
      %800 = vmatpush.bf16.msra.mxu0 0
      %801 = vmatpush.bf16.msra.mxu0 0
      %802 = vmatpush.bf16.msra.mxu0 0
      %803 = vmatpush.bf16.msra.mxu0 0
      %804 = vmatpush.bf16.msra.mxu0 0
      %805 = vmatpush.bf16.msra.mxu0 0
      %806 = vmatpush.bf16.msra.mxu0 0
      %807 = vmatpush.bf16.msra.mxu0 %v796
      %808 = vmatmul.bf16.gmra.mxu0 %v798
      %v809 = vpop.f32.mrf.mxu0
      %v810 = vadd.f32 0.0, %v809
      %v811 = vpop.f32.mrf.mxu0
      %812 = vdwg.mxu0
      %813 = vst.msk [vmem:[#allocation2] sm:$0xff] %vm745, %v810
      %s814 = scalar_lea.vmem %s627, 8
      %v815 = vld [vmem:[%s814] sm:$0xff]
      %s816 = scalar_lea.vmem %s644, 16
      %817 = vst.msk [vmem:[%s816] sm:$0xff] %vm745, %v815
      %s818 = scalar_lea.vmem %s632, 8
      %v819 = vld [vmem:[%s818] sm:$0xff]
      %s820 = scalar_lea.vmem %s649, 16
      %821 = vst.msk [vmem:[%s820] sm:$0xff] %vm745, %v819
      %822 = vrot.lane.b32.xlu0 %v726, 88
      %v823 = vpop.permute.xlu0 %822
      %825 = vst.msk [vmem:[%s816 + $0x8] sm:$0xff] %vm745, %v823
      %826 = vrot.lane.b32.xlu0 %v726, 56
      %v827 = vpop.permute.xlu0 %826
      %829 = vst.msk [vmem:[%s820 + $0x8] sm:$0xff] %vm745, %v827
      %v830 = vld [vmem:[%s816] sm:$0xff]
      %v831 = vld [vmem:[%s816 + $0x8] sm:$0xff]
      %v832 = vld [vmem:[%s820] sm:$0xff]
      %v833 = vld [vmem:[%s820 + $0x8] sm:$0xff]
      %v834 = vpack.c.bf16 %v831, %v830
      %836 = vrot.lane.b32.xlu0 %v762, 120
      %v837 = vpop.permute.xlu0 %836
      %v839 = vsel %vm745, %v837, 0
      %v842 = vsel %vm745, %v834, 0
      %844 = vmatpush.bf16.xpose.msra.mxu0 0
      %845 = vmatpush.bf16.xpose.msra.mxu0 0
      %846 = vmatpush.bf16.xpose.msra.mxu0 0
      %847 = vmatpush.bf16.xpose.msra.mxu0 0
      %848 = vmatpush.bf16.xpose.msra.mxu0 0
      %849 = vmatpush.bf16.xpose.msra.mxu0 0
      %850 = vmatpush.bf16.xpose.msra.mxu0 0
      %851 = vmatpush.bf16.xpose.msra.mxu0 %v842
      %852 = vmatmul.bf16.gmra.mxu0 %v839
      %v853 = vpop.f32.mrf.mxu0
      %v854 = vadd.f32 %v742, %v853
      %v855 = vpop.f32.mrf.mxu0
      %856 = vdwg.mxu0
      %v857 = vsel %vm783, %v854, -inf
      %858 = vmax.xlane.f32.xlu0 %v857
      %v859 = vpop.xlane.xlu0 %858
      %v860 = vsub.f32 %v854, %v859
      %v861 = vmul.f32 %v860, 1.442695
      %v862 = vpow.pop %v861
      %v863 = vsel %vm783, %v862, 0.0
      %864 = vadd.xlane.f32.xlu0 %v863
      %v865 = vpop.xlane.xlu0 %864
      %v866 = vrcp.pop %v865
      %v867 = vmul.f32 %v862, %v866
      %v868 = vpack.c.bf16 %v867, %v867
      %v869 = vpack.c.bf16 %v833, %v832
      %v871 = vsel %vm783, %v868, 0
      %873 = vmatpush.bf16.msra.mxu0 0
      %874 = vmatpush.bf16.msra.mxu0 0
      %875 = vmatpush.bf16.msra.mxu0 0
      %876 = vmatpush.bf16.msra.mxu0 0
      %877 = vmatpush.bf16.msra.mxu0 0
      %878 = vmatpush.bf16.msra.mxu0 0
      %879 = vmatpush.bf16.msra.mxu0 0
      %880 = vmatpush.bf16.msra.mxu0 %v869
      %881 = vmatmul.bf16.gmra.mxu0 %v871
      %v882 = vpop.f32.mrf.mxu0
      %v883 = vadd.f32 0.0, %v882
      %v884 = vpop.f32.mrf.mxu0
      %885 = vdwg.mxu0
      %887 = vrot.lane.b32.xlu0 %v883, 8
      %v888 = vpop.permute.xlu0 %887
      %vm890 = vcmask 130112
      %891 = vst.msk [vmem:[#allocation2] sm:$0xff] %vm890, %v888
      %s892 = scalar_lea.vmem %s627, 16
      %v893 = vld [vmem:[%s892] sm:$0xff]
      %s894 = scalar_lea.vmem %s644, 32
      %895 = vst.msk [vmem:[%s894] sm:$0xff] %vm745, %v893
      %s896 = scalar_lea.vmem %s632, 16
      %v897 = vld [vmem:[%s896] sm:$0xff]
      %s898 = scalar_lea.vmem %s649, 32
      %899 = vst.msk [vmem:[%s898] sm:$0xff] %vm745, %v897
      %900 = vrot.lane.b32.xlu0 %v726, 80
      %v901 = vpop.permute.xlu0 %900
      %903 = vst.msk [vmem:[%s894 + $0x8] sm:$0xff] %vm745, %v901
      %904 = vrot.lane.b32.xlu0 %v726, 48
      %v905 = vpop.permute.xlu0 %904
      %907 = vst.msk [vmem:[%s898 + $0x8] sm:$0xff] %vm745, %v905
      %v908 = vld [vmem:[%s894] sm:$0xff]
      %v909 = vld [vmem:[%s894 + $0x8] sm:$0xff]
      %v910 = vld [vmem:[%s898] sm:$0xff]
      %v911 = vld [vmem:[%s898 + $0x8] sm:$0xff]
      %v912 = vpack.c.bf16 %v909, %v908
      %913 = vrot.lane.b32.xlu0 %v762, 112
      %v914 = vpop.permute.xlu0 %913
      %v916 = vsel %vm745, %v914, 0
      %v919 = vsel %vm745, %v912, 0
      %921 = vmatpush.bf16.xpose.msra.mxu0 0
      %922 = vmatpush.bf16.xpose.msra.mxu0 0
      %923 = vmatpush.bf16.xpose.msra.mxu0 0
      %924 = vmatpush.bf16.xpose.msra.mxu0 0
      %925 = vmatpush.bf16.xpose.msra.mxu0 0
      %926 = vmatpush.bf16.xpose.msra.mxu0 0
      %927 = vmatpush.bf16.xpose.msra.mxu0 0
      %928 = vmatpush.bf16.xpose.msra.mxu0 %v919
      %929 = vmatmul.bf16.gmra.mxu0 %v916
      %v930 = vpop.f32.mrf.mxu0
      %v931 = vadd.f32 %v742, %v930
      %v932 = vpop.f32.mrf.mxu0
      %933 = vdwg.mxu0
      %v934 = vsel %vm783, %v931, -inf
      %935 = vmax.xlane.f32.xlu0 %v934
      %v936 = vpop.xlane.xlu0 %935
      %v937 = vsub.f32 %v931, %v936
      %v938 = vmul.f32 %v937, 1.442695
      %v939 = vpow.pop %v938
      %v940 = vsel %vm783, %v939, 0.0
      %941 = vadd.xlane.f32.xlu0 %v940
      %v942 = vpop.xlane.xlu0 %941
      %v943 = vrcp.pop %v942
      %v944 = vmul.f32 %v939, %v943
      %v945 = vpack.c.bf16 %v944, %v944
      %v946 = vpack.c.bf16 %v911, %v910
      %v948 = vsel %vm783, %v945, 0
      %950 = vmatpush.bf16.msra.mxu0 0
      %951 = vmatpush.bf16.msra.mxu0 0
      %952 = vmatpush.bf16.msra.mxu0 0
      %953 = vmatpush.bf16.msra.mxu0 0
      %954 = vmatpush.bf16.msra.mxu0 0
      %955 = vmatpush.bf16.msra.mxu0 0
      %956 = vmatpush.bf16.msra.mxu0 0
      %957 = vmatpush.bf16.msra.mxu0 %v946
      %958 = vmatmul.bf16.gmra.mxu0 %v948
      %v959 = vpop.f32.mrf.mxu0
      %v960 = vadd.f32 0.0, %v959
      %v961 = vpop.f32.mrf.mxu0
      %962 = vdwg.mxu0
      %964 = vrot.lane.b32.xlu0 %v960, 16
      %v965 = vpop.permute.xlu0 %964
      %vm967 = vcmask 195712
      %968 = vst.msk [vmem:[#allocation2] sm:$0xff] %vm967, %v965
      %s969 = scalar_lea.vmem %s627, 24
      %v970 = vld [vmem:[%s969] sm:$0xff]
      %s971 = scalar_lea.vmem %s644, 48
      %972 = vst.msk [vmem:[%s971] sm:$0xff] %vm745, %v970
      %s973 = scalar_lea.vmem %s632, 24
      %v974 = vld [vmem:[%s973] sm:$0xff]
      %s975 = scalar_lea.vmem %s649, 48
      %976 = vst.msk [vmem:[%s975] sm:$0xff] %vm745, %v974
      %977 = vrot.lane.b32.xlu0 %v726, 72
      %v978 = vpop.permute.xlu0 %977
      %980 = vst.msk [vmem:[%s971 + $0x8] sm:$0xff] %vm745, %v978
      %981 = vrot.lane.b32.xlu0 %v726, 40
      %v982 = vpop.permute.xlu0 %981
      %984 = vst.msk [vmem:[%s975 + $0x8] sm:$0xff] %vm745, %v982
      %v985 = vld [vmem:[%s971] sm:$0xff]
      %v986 = vld [vmem:[%s971 + $0x8] sm:$0xff]
      %v987 = vld [vmem:[%s975] sm:$0xff]
      %v988 = vld [vmem:[%s975 + $0x8] sm:$0xff]
      %v989 = vpack.c.bf16 %v986, %v985
      %990 = vrot.lane.b32.xlu0 %v762, 104
      %v991 = vpop.permute.xlu0 %990
      %v993 = vsel %vm745, %v991, 0
      %v996 = vsel %vm745, %v989, 0
      %998 = vmatpush.bf16.xpose.msra.mxu0 0
      %999 = vmatpush.bf16.xpose.msra.mxu0 0
      %1000 = vmatpush.bf16.xpose.msra.mxu0 0
      %1001 = vmatpush.bf16.xpose.msra.mxu0 0
      %1002 = vmatpush.bf16.xpose.msra.mxu0 0
      %1003 = vmatpush.bf16.xpose.msra.mxu0 0
      %1004 = vmatpush.bf16.xpose.msra.mxu0 0
      %1005 = vmatpush.bf16.xpose.msra.mxu0 %v996
      %1006 = vmatmul.bf16.gmra.mxu0 %v993
      %v1007 = vpop.f32.mrf.mxu0
      %v1008 = vadd.f32 %v742, %v1007
      %v1009 = vpop.f32.mrf.mxu0
      %1010 = vdwg.mxu0
      %v1011 = vsel %vm783, %v1008, -inf
      %1012 = vmax.xlane.f32.xlu0 %v1011
      %v1013 = vpop.xlane.xlu0 %1012
      %v1014 = vsub.f32 %v1008, %v1013
      %v1015 = vmul.f32 %v1014, 1.442695
      %v1016 = vpow.pop %v1015
      %v1017 = vsel %vm783, %v1016, 0.0
      %1018 = vadd.xlane.f32.xlu0 %v1017
      %v1019 = vpop.xlane.xlu0 %1018
      %v1020 = vrcp.pop %v1019
      %v1021 = vmul.f32 %v1016, %v1020
      %v1022 = vpack.c.bf16 %v1021, %v1021
      %v1023 = vpack.c.bf16 %v988, %v987
      %v1025 = vsel %vm783, %v1022, 0
      %1027 = vmatpush.bf16.msra.mxu0 0
      %1028 = vmatpush.bf16.msra.mxu0 0
      %1029 = vmatpush.bf16.msra.mxu0 0
      %1030 = vmatpush.bf16.msra.mxu0 0
      %1031 = vmatpush.bf16.msra.mxu0 0
      %1032 = vmatpush.bf16.msra.mxu0 0
      %1033 = vmatpush.bf16.msra.mxu0 0
      %1034 = vmatpush.bf16.msra.mxu0 %v1023
      %1035 = vmatmul.bf16.gmra.mxu0 %v1025
      %v1036 = vpop.f32.mrf.mxu0
      %v1037 = vadd.f32 0.0, %v1036
      %v1038 = vpop.f32.mrf.mxu0
      %1039 = vdwg.mxu0
      %1041 = vrot.lane.b32.xlu0 %v1037, 24
      %v1042 = vpop.permute.xlu0 %1041
      %vm1044 = vcmask 261312
      %1045 = vst.msk [vmem:[#allocation2] sm:$0xff] %vm1044, %v1042
      %v1046 = vld [vmem:[#allocation2] sm:$0xff]
      %v1047 = vpack.c.bf16 %v1046, %v1046
      %v1048 = vld [vmem:[%s8] sm:$0xf]
      %v1049 = vld [vmem:[%s8 + $0x4] sm:$0xf]
      %v1050 = vld [vmem:[%s8 + $0x8] sm:$0xf]
      %v1051 = vld [vmem:[%s8 + $0xc] sm:$0xf]
      %v1052 = vld [vmem:[%s9] sm:$0x1]
      %v1054 = vperm.slane %v1052, 0
      %v1060 = vunpack.c.l.b16 %v1048
      %v1061 = vunpack.c.l.b16 %v1049
      %v1062 = vunpack.c.l.b16 %v1050
      %v1063 = vunpack.c.l.b16 %v1051
      %v1064 = vpack.c.b16 %v1061, %v1060
      %v1065 = vpack.c.b16 %v1063, %v1062
      %v1069 = vsel %vm652, %v1047, 0
      %1071 = vmatpush.bf16.msra.mxu0 0
      %1072 = vmatpush.bf16.msra.mxu0 0
      %1073 = vmatpush.bf16.msra.mxu0 0
      %1074 = vmatpush.bf16.msra.mxu0 0
      %1075 = vmatpush.bf16.msra.mxu0 0
      %1076 = vmatpush.bf16.msra.mxu0 0
      %1077 = vmatpush.bf16.msra.mxu0 %v1065
      %1078 = vmatpush.bf16.msra.mxu0 %v1064
      %1079 = vmatmul.bf16.gmra.mxu0 %v1069
      %v1080 = vpop.f32.mrf.mxu0
      %v1081 = vadd.f32 %v1054, %v1080
      %v1082 = vpop.f32.mrf.mxu0
      %1083 = vdwg.mxu0
      %v1084 = vadd.f32 %v651, %v1081
      %v1085 = vsel %vm652, %v1084, 0.0
      %1086 = vadd.xlane.f32.xlu0 %v1085
      %v1087 = vpop.xlane.xlu0 %1086
      %v1088 = vmul.f32 %v1087, %v662
      %v1089 = vsub.f32 %v1084, %v1088
      %v1090 = vmul.f32 %v1089, %v1089
      %v1091 = vsel %vm652, %v1090, 0.0
      %1092 = vadd.xlane.f32.xlu0 %v1091
      %v1093 = vpop.xlane.xlu0 %1092
      %v1094 = vmul.f32 %v1093, %v662
      %v1095 = vadd.f32 %v1094, 1e-05
      %v1096 = vrsqrt.pop %v1095
      %v1097 = vmul.f32 %v1096, %v1095
      %v1098 = vmul.f32 %v1097, %v1096
      %v1099 = vmul.f32 0.5, %v1098
      %v1100 = vsub.f32 1.5, %v1099
      %v1101 = vmul.f32 %v1096, %v1100
      %vm1102 = vweird.f32 %v1095
      %vm1103 = vweird.f32 %v1096
      %vm1104 = vmor %vm1102, %vm1103
      %v1105 = vsel %vm1104, %v1096, %v1101
      %v1106 = vmul.f32 %v1089, %v1105
      %v1107 = vld [vmem:[%s10] sm:$0x1]
      %v1109 = vperm.slane %v1107, 0
      %v1111 = vmul.f32 %v1106, %v1109
      %v1112 = vld [vmem:[%s11] sm:$0x1]
      %v1114 = vperm.slane %v1112, 0
      %v1116 = vadd.f32 %v1111, %v1114
      %v1117 = vpack.c.bf16 %v1116, %v1116
      %v1118 = vld [vmem:[%s12] sm:$0xf]
      %v1119 = vld [vmem:[%s12 + $0x4] sm:$0xf]
      %v1120 = vld [vmem:[%s12 + $0x8] sm:$0xf]
      %v1121 = vld [vmem:[%s12 + $0xc] sm:$0xf]
      %v1122 = vld [vmem:[%s13] sm:$0x1]
      %v1124 = vperm.slane %v1122, 0
      %v1130 = vunpack.c.l.b16 %v1118
      %v1131 = vunpack.c.l.b16 %v1119
      %v1132 = vunpack.c.l.b16 %v1120
      %v1133 = vunpack.c.l.b16 %v1121
      %v1134 = vpack.c.b16 %v1131, %v1130
      %v1135 = vpack.c.b16 %v1133, %v1132
      %v1139 = vsel %vm652, %v1117, 0
      %1141 = vmatpush.bf16.msra.mxu0 0
      %1142 = vmatpush.bf16.msra.mxu0 0
      %1143 = vmatpush.bf16.msra.mxu0 0
      %1144 = vmatpush.bf16.msra.mxu0 0
      %1145 = vmatpush.bf16.msra.mxu0 0
      %1146 = vmatpush.bf16.msra.mxu0 0
      %1147 = vmatpush.bf16.msra.mxu0 %v1135
      %1148 = vmatpush.bf16.msra.mxu0 %v1134
      %1149 = vmatmul.bf16.gmra.mxu0 %v1139
      %v1150 = vpop.f32.mrf.mxu0
      %v1151 = vadd.f32 %v1124, %v1150
      %v1152 = vpop.f32.mrf.mxu0
      %1153 = vdwg.mxu0
      %v1154 = vmul.f32 %v1151, 0.5
      %v1155 = vmul.f32 %v1151, 0.044715
      %v1156 = vmul.f32 %v1155, %v1151
      %v1157 = vmul.f32 %v1156, %v1151
      %v1158 = vadd.f32 %v1151, %v1157
      %v1159 = vmul.f32 %v1158, 0.7978846
      %v1160 = vtanh.pop %v1159
      %v1161 = vadd.f32 %v1160, 1.0
      %v1162 = vmul.f32 %v1154, %v1161
      %v1163 = vpack.c.bf16 %v1162, %v1162
      %v1164 = vld [vmem:[%s14] sm:$0xf]
      %v1165 = vld [vmem:[%s14 + $0x4] sm:$0xf]
      %v1166 = vld [vmem:[%s14 + $0x8] sm:$0xf]
      %v1167 = vld [vmem:[%s14 + $0xc] sm:$0xf]
      %v1168 = vld [vmem:[%s14 + $0x10] sm:$0xf]
      %v1169 = vld [vmem:[%s14 + $0x14] sm:$0xf]
      %v1170 = vld [vmem:[%s14 + $0x18] sm:$0xf]
      %v1171 = vld [vmem:[%s14 + $0x1c] sm:$0xf]
      %v1172 = vld [vmem:[%s14 + $0x20] sm:$0xf]
      %v1173 = vld [vmem:[%s14 + $0x24] sm:$0xf]
      %v1174 = vld [vmem:[%s14 + $0x28] sm:$0xf]
      %v1175 = vld [vmem:[%s14 + $0x2c] sm:$0xf]
      %v1176 = vld [vmem:[%s14 + $0x30] sm:$0xf]
      %v1177 = vld [vmem:[%s14 + $0x34] sm:$0xf]
      %v1178 = vld [vmem:[%s14 + $0x38] sm:$0xf]
      %v1179 = vld [vmem:[%s14 + $0x3c] sm:$0xf]
      %v1180 = vld [vmem:[%s15] sm:$0x1]
      %v1182 = vperm.slane %v1180, 0
      %v1200 = vunpack.c.l.b16 %v1164
      %v1201 = vunpack.c.l.b16 %v1165
      %v1202 = vunpack.c.l.b16 %v1166
      %v1203 = vunpack.c.l.b16 %v1167
      %v1204 = vunpack.c.l.b16 %v1168
      %v1205 = vunpack.c.l.b16 %v1169
      %v1206 = vunpack.c.l.b16 %v1170
      %v1207 = vunpack.c.l.b16 %v1171
      %v1208 = vunpack.c.l.b16 %v1172
      %v1209 = vunpack.c.l.b16 %v1173
      %v1210 = vunpack.c.l.b16 %v1174
      %v1211 = vunpack.c.l.b16 %v1175
      %v1212 = vunpack.c.l.b16 %v1176
      %v1213 = vunpack.c.l.b16 %v1177
      %v1214 = vunpack.c.l.b16 %v1178
      %v1215 = vunpack.c.l.b16 %v1179
      %v1216 = vpack.c.b16 %v1201, %v1200
      %v1217 = vpack.c.b16 %v1203, %v1202
      %v1218 = vpack.c.b16 %v1205, %v1204
      %v1219 = vpack.c.b16 %v1207, %v1206
      %v1220 = vpack.c.b16 %v1209, %v1208
      %v1221 = vpack.c.b16 %v1211, %v1210
      %v1222 = vpack.c.b16 %v1213, %v1212
      %v1223 = vpack.c.b16 %v1215, %v1214
      %1232 = vmatpush.bf16.msra.mxu0 %v1223
      %1233 = vmatpush.bf16.msra.mxu0 %v1222
      %1234 = vmatpush.bf16.msra.mxu0 %v1221
      %1235 = vmatpush.bf16.msra.mxu0 %v1220
      %1236 = vmatpush.bf16.msra.mxu0 %v1219
      %1237 = vmatpush.bf16.msra.mxu0 %v1218
      %1238 = vmatpush.bf16.msra.mxu0 %v1217
      %1239 = vmatpush.bf16.msra.mxu0 %v1216
      %1240 = vmatmul.bf16.gmra.mxu0 %v1163
      %v1241 = vpop.f32.mrf.mxu0
      %v1242 = vadd.f32 %v1182, %v1241
      %v1243 = vpop.f32.mrf.mxu0
      %1244 = vdwg.mxu0
      %v1245 = vadd.f32 %v1084, %v1242
      %1246 = vst.msk [vmem:[%s639] sm:$0xff] %vm652, %v1245
      %p1247 = scmp.lt.s32.totalorder %s30, 1
      %s1248 = scalar_select %p1247, %s30, 1
      %s1249 = smul.addr %s1248, 8
      %s1250 = scalar_lea.vmem %s16, %s1249
      %p1251 = scmp.lt.s32.totalorder %s30, 1
      %s1252 = scalar_select %p1251, %s30, 1
      %s1253 = smul.addr %s1252, 8
      %s1254 = smul.addr %s1253, 8
      %s1255 = scalar_lea.vmem %s17, %s1254
      %p1256 = scmp.lt.s32.totalorder %s30, 1
      %s1257 = scalar_select %p1256, %s30, 1
      %s1258 = smul.addr %s1257, 8
      %s1259 = smul.addr %s1258, 8
      %s1260 = scalar_lea.vmem %s18, %s1259
      // Predicated region
      $region85: #{wrapper_forward.3} parent=83 // pred_check
        %p1261 = pneg %p404
      $region86: #{wrapper_forward.3} parent=83 // pred_check_branch
        %1263 = sbr.rel (%p1261) target = $region88
      $region87: #{wrapper_forward.3} parent=83 // pred_region
        _
      $region88: #{wrapper_forward.3} parent=83 // pred_fallthru
        _
      // Predicated region
      $region89: #{wrapper_forward.3} parent=83 // pred_check
        %p1264 = pneg %p430
      $region90: #{wrapper_forward.3} parent=83 // pred_check_branch
        %1266 = sbr.rel (%p1264) target = $region92
      $region91: #{wrapper_forward.3} parent=83 // pred_region
        _
      $region92: #{wrapper_forward.3} parent=83 // pred_fallthru
        _
      // Predicated region
      $region93: #{wrapper_forward.3} parent=83 // pred_check
        %p1267 = pneg %p456
      $region94: #{wrapper_forward.3} parent=83 // pred_check_branch
        %1269 = sbr.rel (%p1267) target = $region96
      $region95: #{wrapper_forward.3} parent=83 // pred_region
        _
      $region96: #{wrapper_forward.3} parent=83 // pred_fallthru
        _
    $region84: #{wrapper_forward.3} parent=5 // pred_fallthru
      _
    %p1270 = scmp.le.s32.totalorder 2, %s25
    // Predicated region
    $region97: #{wrapper_forward.3} parent=5 // pred_check
      %p1271 = pneg %p1270
    $region98: #{wrapper_forward.3} parent=5 // pred_check_branch
      %1273 = sbr.rel (%p1271) target = $region100
    $region99: #{wrapper_forward.3} parent=5 // pred_region
      %s1274 = ssub.s32 %s25, 2
      // Predicated region
      $region101: #{wrapper_forward.3} parent=99 // pred_check
        %p1275 = pneg %p410
      $region102: #{wrapper_forward.3} parent=99 // pred_check_branch
        %1277 = sbr.rel (%p1275) target = $region104
      $region103: #{wrapper_forward.3} parent=99 // pred_region
        %p1278 = scmp.lt.s32.totalorder %s31, 1
        %s1279 = scalar_select %p1278, %s31, 1
        %s1280 = smul.addr %s1279, 8
        %s1281 = scalar_lea.vmem %s16, %s1280
      $region104: #{wrapper_forward.3} parent=99 // pred_fallthru
        _
      // Predicated region
      $region105: #{wrapper_forward.3} parent=99 // pred_check
        %p1282 = pneg %p436
      $region106: #{wrapper_forward.3} parent=99 // pred_check_branch
        %1284 = sbr.rel (%p1282) target = $region108
      $region107: #{wrapper_forward.3} parent=99 // pred_region
        %p1285 = scmp.lt.s32.totalorder %s31, 1
        %s1286 = scalar_select %p1285, %s31, 1
        %s1287 = smul.addr %s1286, 8
        %s1288 = smul.addr %s1287, 8
        %s1289 = scalar_lea.vmem %s17, %s1288
      $region108: #{wrapper_forward.3} parent=99 // pred_fallthru
        _
      // Predicated region
      $region109: #{wrapper_forward.3} parent=99 // pred_check
        %p1290 = pneg %p462
      $region110: #{wrapper_forward.3} parent=99 // pred_check_branch
        %1292 = sbr.rel (%p1290) target = $region112
      $region111: #{wrapper_forward.3} parent=99 // pred_region
        %p1293 = scmp.lt.s32.totalorder %s31, 1
        %s1294 = scalar_select %p1293, %s31, 1
        %s1295 = smul.addr %s1294, 8
        %s1296 = smul.addr %s1295, 8
        %s1297 = scalar_lea.vmem %s18, %s1296
      $region112: #{wrapper_forward.3} parent=99 // pred_fallthru
        _
    $region100: #{wrapper_forward.3} parent=5 // pred_fallthru
      _
  $region6: #{wrapper_forward.3} parent=0 // loop_footer
    %s29 = sadd.s32 1, %s25
  $region7: #{wrapper_forward.3} parent=0 // loop_footer_branch
    %24 = sbr.rel target = $region3
  $region8: #{wrapper_forward.3} parent=0 // loop_exit
    _

</llo_original>
